<compile_context>
chip_gen: v5e
topology: v5e:2x2
jax: 0.10.0
libtpu: 0.0.40
codegen_flags: <defaults>
</compile_context>

<pallas_src>
import functools

import jax
import jax.numpy as jnp
from jax.experimental import pallas as pl
from jax.experimental.pallas import tpu as pltpu


def _wh_row(var_dim):
    """Row offset of the recurrent (H,3H) panel inside the packed GRU slab.

    Layout: [wi (V rows) | b_main (1) | b_hn (1) | zero pad | wh (H rows)],
    padded so the recurrent panel starts on an 8-row (sublane-tile) boundary.
    """
    head = var_dim + 2
    return head + (-head) % 8


# ----------------------------------------------------------------------------
# Fused kernel: encoder GRU -> +noise -> decoder GRU (shifted input) -> FC.
# Inputs are batch-major 2D slabs (B*T, V); output is batch-major (B*T, V).
# ----------------------------------------------------------------------------
def netg_kernel(xp_ref, xf_ref, noise_ref, w_gru_ref, w_fc_ref, out_ref,
                *, T, B, V, H):
    f32 = jnp.float32
    H2, H3 = 2 * H, 3 * H
    whr = _wh_row(V)

    def dot(a, b):
        return jnp.dot(a, b, preferred_element_type=f32)

    def unpack(w):                       # w: (whr + H, 3H) value
        wi = w[0:V, :]                   # (V, 3H)  fused [r|z|n] input weights
        b_main = w[V:V + 1, :]           # (1, 3H)  [b_ir+b_hr | b_iz+b_hz | b_in]
        b_hn = w[V + 1:V + 2, 0:H]       # (1, H)   b_hn (must stay inside r-gate)
        wh = w[whr:whr + H, :]           # (H, 3H)  fused recurrent weights
        return wi, wh, b_main, b_hn

    wi_e, wh_e, b_e, bhn_e = unpack(w_gru_ref[0])
    wi_d, wh_d, b_d, bhn_d = unpack(w_gru_ref[1])
    w_fc = w_fc_ref[0:H, :]              # (H, V)
    b_fc = w_fc_ref[H:H + 1, :]          # (1, V)

    # ---- hoisted fused input projections: ONE matmul per GRU ---------------
    gi_e = dot(xp_ref[...], wi_e) + b_e  # (B*T, 3H), batch-major rows b*T + t
    gi_d = dot(xf_ref[...], wi_d) + b_d  # (B*T, 3H)

    def pick(g, t):
        # Rows {b*T + t, b=0..B-1} -> (B, 3H).  Static row slices + concat;
        # independent of h, so off the serial recurrent critical path.
        return jnp.concatenate(
            [g[b * T + t:b * T + t + 1, :] for b in range(B)], axis=0)

    def gru_step(g, h, wh, b_hn):
        gh = dot(h, wh)                                   # single fused (B,H)x(H,3H)
        rz = jax.nn.sigmoid(g[:, 0:H2] + gh[:, 0:H2])     # one EUP pass for r|z
        r = rz[:, 0:H]
        z = rz[:, H:H2]
        n = jnp.tanh(g[:, H2:H3] + r * (gh[:, H2:H3] + b_hn))
        return (1.0 - z) * n + z * h

    # ---- encoder: only the final h is consumed; it never leaves vregs ------
    h = jnp.zeros((B, H), f32)           # PyTorch default h0 = 0
    for t in range(T):                   # fully unrolled (static T)
        h = gru_step(pick(gi_e, t), h, wh_e, bhn_e)

    # hidden = h_t + noise  -> decoder initial state
    h = h + noise_ref[...]

    # ---- decoder over right-shifted X_f -------------------------------------
    # Shift handled by index offset: step 0 sees zero input (=> bias only),
    # step t>=1 sees X_f[:, t-1].  No shifted copy of X_f is materialized.
    hs = []
    for t in range(T):
        g = b_d if t == 0 else pick(gi_d, t - 1)
        h = gru_step(g, h, wh_d, bhn_d)
        hs.append(h)

    # ---- FC hoisted out of the loop: assemble batch-major, 1 matmul, 1 store
    hs_bm = jnp.concatenate(
        [hs[t][b:b + 1, :] for b in range(B) for t in range(T)], axis=0)  # (B*T, H)
    out_ref[...] = dot(hs_bm, w_fc) + b_fc


# ----------------------------------------------------------------------------
# Wrapper: only free reshapes + a single grid-less pallas_call (5 operands).
# ----------------------------------------------------------------------------
def netg_forward(params, X_p, X_f, noise):
    B, T, V = X_p.shape
    H = params["w_fc_b"].shape[0] - 1

    xp2 = X_p.reshape(B * T, V)          # free reshape, batch-major rows
    xf2 = X_f.reshape(B * T, V)
    noise2 = noise.reshape(B, H)

    vmem = pl.BlockSpec(memory_space=pltpu.MemorySpace.VMEM)
    y = pl.pallas_call(
        functools.partial(netg_kernel, T=T, B=B, V=V, H=H),
        out_shape=jax.ShapeDtypeStruct((B * T, V), jnp.float32),
        in_specs=[vmem] * 5,
        out_specs=vmem,
    )(xp2, xf2, noise2, params["w_gru"], params["w_fc_b"])

    return y.reshape(B, T, V)            # free reshape back to (B, T, V)


netg_forward = jax.jit(netg_forward)


# ----------------------------------------------------------------------------
# Parameters: raw PyTorch layout + one-time offline repacking for the kernel.
# ----------------------------------------------------------------------------
def init_raw_params(key, var_dim, hid_dim):
    """PyTorch-layout params: GRU weight_ih (3H,V), weight_hh (3H,H), biases
    (3H,) with gate order [r|z|n]; Linear weight (V,H), bias (V,)."""
    ks = jax.random.split(key, 10)
    bound = 1.0 / float(hid_dim) ** 0.5

    def u(k, shape):
        return jax.random.uniform(k, shape, jnp.float32, -bound, bound)

    return {
        "w_ih_enc": u(ks[0], (3 * hid_dim, var_dim)),
        "w_hh_enc": u(ks[1], (3 * hid_dim, hid_dim)),
        "b_ih_enc": u(ks[2], (3 * hid_dim,)),
        "b_hh_enc": u(ks[3], (3 * hid_dim,)),
        "w_ih_dec": u(ks[4], (3 * hid_dim, var_dim)),
        "w_hh_dec": u(ks[5], (3 * hid_dim, hid_dim)),
        "b_ih_dec": u(ks[6], (3 * hid_dim,)),
        "b_hh_dec": u(ks[7], (3 * hid_dim,)),
        "w_fc": u(ks[8], (var_dim, hid_dim)),
        "b_fc": u(ks[9], (var_dim,)),
    }


def pack_params(raw):
    """Offline repack into 2 kernel operands:
      w_gru  : (2, whr+H, 3H)  -- enc/dec slabs: [wi | b_main | b_hn | pad | wh]
      w_fc_b : (H+1, V)        -- [w_fc^T ; b_fc]
    Biases pre-folded: (b_ir+b_hr), (b_iz+b_hz), b_in go into the fused main
    bias; b_hn stays separate (must remain inside the r-gated term)."""
    H = raw["w_hh_enc"].shape[1]
    V = raw["w_ih_enc"].shape[1]
    whr = _wh_row(V)

    def pack_gru(w_ih, w_hh, b_ih, b_hh):
        wi = w_ih.T                                                   # (V, 3H)
        wh = w_hh.T                                                   # (H, 3H)
        b_main = jnp.concatenate(
            [b_ih[0:2 * H] + b_hh[0:2 * H], b_ih[2 * H:3 * H]])[None, :]   # (1, 3H)
        b_hn = jnp.concatenate(
            [b_hh[2 * H:3 * H], jnp.zeros((2 * H,), jnp.float32)])[None, :]  # (1, 3H)
        pad = jnp.zeros((whr - V - 2, 3 * H), jnp.float32)
        return jnp.concatenate([wi, b_main, b_hn, pad, wh], axis=0)   # (whr+H, 3H)

    w_enc = pack_gru(raw["w_ih_enc"], raw["w_hh_enc"],
                     raw["b_ih_enc"], raw["b_hh_enc"])
    w_dec = pack_gru(raw["w_ih_dec"], raw["w_hh_dec"],
                     raw["b_ih_dec"], raw["b_hh_dec"])
    return {
        "w_gru": jnp.stack([w_enc, w_dec], axis=0),                   # (2, whr+H, 3H)
        "w_fc_b": jnp.concatenate(
            [raw["w_fc"].T, raw["b_fc"][None, :]], axis=0),           # (H+1, V)
    }


# ----------------------------------------------------------------------------
# Pure-JAX reference (mirrors the PyTorch module) for a correctness check.
# ----------------------------------------------------------------------------
def _gru_ref(x, h0, w_ih, w_hh, b_ih, b_hh):
    B, T, _ = x.shape
    H = h0.shape[-1]
    hp = jax.lax.Precision.HIGHEST
    h = h0
    outs = []
    for t in range(T):
        gi = jnp.dot(x[:, t, :], w_ih.T, precision=hp) + b_ih
        gh = jnp.dot(h, w_hh.T, precision=hp) + b_hh
        r = jax.nn.sigmoid(gi[:, :H] + gh[:, :H])
        z = jax.nn.sigmoid(gi[:, H:2 * H] + gh[:, H:2 * H])
        n = jnp.tanh(gi[:, 2 * H:] + r * gh[:, 2 * H:])
        h = (1.0 - z) * n + z * h
        outs.append(h)
    return jnp.stack(outs, axis=1), h


def netg_reference(raw, X_p, X_f, noise):
    B, T, V = X_p.shape
    H = raw["w_hh_enc"].shape[1]
    _, h_t = _gru_ref(X_p, jnp.zeros((B, H), jnp.float32),
                      raw["w_ih_enc"], raw["w_hh_enc"],
                      raw["b_ih_enc"], raw["b_hh_enc"])
    X_f_shft = jnp.concatenate(
        [jnp.zeros((B, 1, V), X_f.dtype), X_f[:, :-1, :]], axis=1)
    hidden = h_t + noise[0]
    Y_f, _ = _gru_ref(X_f_shft, hidden,
                      raw["w_ih_dec"], raw["w_hh_dec"],
                      raw["b_ih_dec"], raw["b_hh_dec"])
    hp = jax.lax.Precision.HIGHEST
    return jnp.einsum("bth,vh->btv", Y_f, raw["w_fc"], precision=hp) + raw["b_fc"]


if __name__ == "__main__":
    # Small shapes consistent with the module: batch=2, wnd_dim=8 (seq),
    # var_dim=4, RNN_hid_dim=32.
    B, T, V, H = 2, 8, 4, 32

    key = jax.random.PRNGKey(0)
    k_p, k_f, k_n, k_w = jax.random.split(key, 4)

    X_p = jax.random.normal(k_p, (B, T, V), jnp.float32)
    X_f = jax.random.normal(k_f, (B, T, V), jnp.float32)
    noise = jax.random.normal(k_n, (1, B, H), jnp.float32)   # same shape as h_t

    raw = init_raw_params(k_w, V, H)
    params = pack_params(raw)

    out = netg_forward(params, X_p, X_f, noise)
    out = jax.block_until_ready(out)

    assert out.shape == (B, T, V), out.shape
    assert out.dtype == jnp.float32

    ref = netg_reference(raw, X_p, X_f, noise)
    max_err = float(jnp.max(jnp.abs(out - ref)))
    assert max_err < 1e-3, f"mismatch vs pure-JAX reference: {max_err}"

    print("KERNEL_OK")
</pallas_src>

<mosaic_0001>
module attributes {stable_mosaic.version = 11 : i64} {
  func.func @netg_kernel(%arg0: memref<16x4xf32, #tpu.memory_space<vmem>>, %arg1: memref<16x4xf32, #tpu.memory_space<vmem>>, %arg2: memref<2x32xf32, #tpu.memory_space<vmem>>, %arg3: memref<2x40x96xf32, #tpu.memory_space<vmem>>, %arg4: memref<33x4xf32, #tpu.memory_space<vmem>>, %arg5: memref<16x4xf32, #tpu.memory_space<vmem>>) attributes {dimension_semantics = [], scalar_prefetch = 0 : i64, scratch_operands = 0 : i64, tpu.core_type = #tpu.core_type<tc>} {
    %c0 = arith.constant 0 : index
    %c0_0 = arith.constant 0 : index
    %c0_1 = arith.constant 0 : index
    %0 = vector.load %arg3[%c0, %c0_0, %c0_1] : memref<2x40x96xf32, #tpu.memory_space<vmem>>, vector<1x40x96xf32>
    %1 = vector.shape_cast %0 : vector<1x40x96xf32> to vector<40x96xf32>
    %2 = vector.extract_strided_slice %1 {offsets = [0, 0], sizes = [4, 96], strides = [1, 1]} : vector<40x96xf32> to vector<4x96xf32>
    %3 = vector.extract_strided_slice %1 {offsets = [4, 0], sizes = [1, 96], strides = [1, 1]} : vector<40x96xf32> to vector<1x96xf32>
    %4 = vector.extract_strided_slice %1 {offsets = [5, 0], sizes = [1, 32], strides = [1, 1]} : vector<40x96xf32> to vector<1x32xf32>
    %5 = vector.extract_strided_slice %1 {offsets = [8, 0], sizes = [32, 96], strides = [1, 1]} : vector<40x96xf32> to vector<32x96xf32>
    %c1 = arith.constant 1 : index
    %c0_2 = arith.constant 0 : index
    %c0_3 = arith.constant 0 : index
    %6 = vector.load %arg3[%c1, %c0_2, %c0_3] : memref<2x40x96xf32, #tpu.memory_space<vmem>>, vector<1x40x96xf32>
    %7 = vector.shape_cast %6 : vector<1x40x96xf32> to vector<40x96xf32>
    %8 = vector.extract_strided_slice %7 {offsets = [0, 0], sizes = [4, 96], strides = [1, 1]} : vector<40x96xf32> to vector<4x96xf32>
    %9 = vector.extract_strided_slice %7 {offsets = [4, 0], sizes = [1, 96], strides = [1, 1]} : vector<40x96xf32> to vector<1x96xf32>
    %10 = vector.extract_strided_slice %7 {offsets = [5, 0], sizes = [1, 32], strides = [1, 1]} : vector<40x96xf32> to vector<1x32xf32>
    %11 = vector.extract_strided_slice %7 {offsets = [8, 0], sizes = [32, 96], strides = [1, 1]} : vector<40x96xf32> to vector<32x96xf32>
    %c0_4 = arith.constant 0 : index
    %c0_5 = arith.constant 0 : index
    %12 = vector.load %arg4[%c0_4, %c0_5] : memref<33x4xf32, #tpu.memory_space<vmem>>, vector<32x4xf32>
    %c32 = arith.constant 32 : index
    %c0_6 = arith.constant 0 : index
    %13 = vector.load %arg4[%c32, %c0_6] : memref<33x4xf32, #tpu.memory_space<vmem>>, vector<1x4xf32>
    %c0_7 = arith.constant 0 : index
    %c0_8 = arith.constant 0 : index
    %14 = vector.load %arg0[%c0_7, %c0_8] : memref<16x4xf32, #tpu.memory_space<vmem>>, vector<16x4xf32>
    %cst = arith.constant dense<0.000000e+00> : vector<16x96xf32>
    %15 = tpu.matmul %14, %2, %cst {dimension_numbers = #tpu.dot_dimension_numbers<[1], [0], [0], [1], [0, 0, 1, 1], [], []>} : vector<16x4xf32>, vector<4x96xf32>, vector<16x96xf32> -> vector<16x96xf32>
    %16 = vector.broadcast %3 : vector<1x96xf32> to vector<16x96xf32>
    %17 = arith.addf %15, %16 : vector<16x96xf32>
    %c0_9 = arith.constant 0 : index
    %c0_10 = arith.constant 0 : index
    %18 = vector.load %arg1[%c0_9, %c0_10] : memref<16x4xf32, #tpu.memory_space<vmem>>, vector<16x4xf32>
    %cst_11 = arith.constant dense<0.000000e+00> : vector<16x96xf32>
    %19 = tpu.matmul %18, %8, %cst_11 {dimension_numbers = #tpu.dot_dimension_numbers<[1], [0], [0], [1], [0, 0, 1, 1], [], []>} : vector<16x4xf32>, vector<4x96xf32>, vector<16x96xf32> -> vector<16x96xf32>
    %20 = vector.broadcast %9 : vector<1x96xf32> to vector<16x96xf32>
    %21 = arith.addf %19, %20 : vector<16x96xf32>
    %cst_12 = arith.constant 0.000000e+00 : f32
    %22 = vector.broadcast %cst_12 : f32 to vector<2x32xf32>
    %23 = vector.extract_strided_slice %17 {offsets = [0, 0], sizes = [1, 96], strides = [1, 1]} : vector<16x96xf32> to vector<1x96xf32>
    %24 = vector.extract_strided_slice %17 {offsets = [8, 0], sizes = [1, 96], strides = [1, 1]} : vector<16x96xf32> to vector<1x96xf32>
    %25 = tpu.concatenate %23, %24 in 0 : vector<1x96xf32>, vector<1x96xf32> -> vector<2x96xf32>
    %cst_13 = arith.constant dense<0.000000e+00> : vector<2x96xf32>
    %26 = tpu.matmul %22, %5, %cst_13 {dimension_numbers = #tpu.dot_dimension_numbers<[1], [0], [0], [1], [0, 0, 1, 1], [], []>} : vector<2x32xf32>, vector<32x96xf32>, vector<2x96xf32> -> vector<2x96xf32>
    %27 = vector.extract_strided_slice %25 {offsets = [0, 0], sizes = [2, 64], strides = [1, 1]} : vector<2x96xf32> to vector<2x64xf32>
    %28 = vector.extract_strided_slice %26 {offsets = [0, 0], sizes = [2, 64], strides = [1, 1]} : vector<2x96xf32> to vector<2x64xf32>
    %29 = arith.addf %27, %28 : vector<2x64xf32>
    %30 = arith.negf %29 : vector<2x64xf32>
    %31 = math.exp %30 : vector<2x64xf32>
    %cst_14 = arith.constant 1.000000e+00 : f32
    %32 = vector.broadcast %cst_14 : f32 to vector<2x64xf32>
    %33 = arith.addf %32, %31 : vector<2x64xf32>
    %34 = arith.divf %32, %33 : vector<2x64xf32>
    %35 = vector.extract_strided_slice %34 {offsets = [0, 0], sizes = [2, 32], strides = [1, 1]} : vector<2x64xf32> to vector<2x32xf32>
    %36 = vector.extract_strided_slice %34 {offsets = [0, 32], sizes = [2, 32], strides = [1, 1]} : vector<2x64xf32> to vector<2x32xf32>
    %37 = vector.extract_strided_slice %25 {offsets = [0, 64], sizes = [2, 32], strides = [1, 1]} : vector<2x96xf32> to vector<2x32xf32>
    %38 = vector.extract_strided_slice %26 {offsets = [0, 64], sizes = [2, 32], strides = [1, 1]} : vector<2x96xf32> to vector<2x32xf32>
    %39 = vector.broadcast %4 : vector<1x32xf32> to vector<2x32xf32>
    %40 = arith.addf %38, %39 : vector<2x32xf32>
    %41 = arith.mulf %35, %40 : vector<2x32xf32>
    %42 = arith.addf %37, %41 : vector<2x32xf32>
    %43 = math.tanh %42 : vector<2x32xf32>
    %cst_15 = arith.constant 1.000000e+00 : f32
    %44 = vector.broadcast %cst_15 : f32 to vector<2x32xf32>
    %45 = arith.subf %44, %36 : vector<2x32xf32>
    %46 = arith.mulf %45, %43 : vector<2x32xf32>
    %47 = arith.mulf %36, %22 : vector<2x32xf32>
    %48 = arith.addf %46, %47 : vector<2x32xf32>
    %49 = vector.extract_strided_slice %17 {offsets = [1, 0], sizes = [1, 96], strides = [1, 1]} : vector<16x96xf32> to vector<1x96xf32>
    %50 = vector.extract_strided_slice %17 {offsets = [9, 0], sizes = [1, 96], strides = [1, 1]} : vector<16x96xf32> to vector<1x96xf32>
    %51 = tpu.concatenate %49, %50 in 0 : vector<1x96xf32>, vector<1x96xf32> -> vector<2x96xf32>
    %cst_16 = arith.constant dense<0.000000e+00> : vector<2x96xf32>
    %52 = tpu.matmul %48, %5, %cst_16 {dimension_numbers = #tpu.dot_dimension_numbers<[1], [0], [0], [1], [0, 0, 1, 1], [], []>} : vector<2x32xf32>, vector<32x96xf32>, vector<2x96xf32> -> vector<2x96xf32>
    %53 = vector.extract_strided_slice %51 {offsets = [0, 0], sizes = [2, 64], strides = [1, 1]} : vector<2x96xf32> to vector<2x64xf32>
    %54 = vector.extract_strided_slice %52 {offsets = [0, 0], sizes = [2, 64], strides = [1, 1]} : vector<2x96xf32> to vector<2x64xf32>
    %55 = arith.addf %53, %54 : vector<2x64xf32>
    %56 = arith.negf %55 : vector<2x64xf32>
    %57 = math.exp %56 : vector<2x64xf32>
    %cst_17 = arith.constant 1.000000e+00 : f32
    %58 = vector.broadcast %cst_17 : f32 to vector<2x64xf32>
    %59 = arith.addf %58, %57 : vector<2x64xf32>
    %60 = arith.divf %58, %59 : vector<2x64xf32>
    %61 = vector.extract_strided_slice %60 {offsets = [0, 0], sizes = [2, 32], strides = [1, 1]} : vector<2x64xf32> to vector<2x32xf32>
    %62 = vector.extract_strided_slice %60 {offsets = [0, 32], sizes = [2, 32], strides = [1, 1]} : vector<2x64xf32> to vector<2x32xf32>
    %63 = vector.extract_strided_slice %51 {offsets = [0, 64], sizes = [2, 32], strides = [1, 1]} : vector<2x96xf32> to vector<2x32xf32>
    %64 = vector.extract_strided_slice %52 {offsets = [0, 64], sizes = [2, 32], strides = [1, 1]} : vector<2x96xf32> to vector<2x32xf32>
    %65 = vector.broadcast %4 : vector<1x32xf32> to vector<2x32xf32>
    %66 = arith.addf %64, %65 : vector<2x32xf32>
    %67 = arith.mulf %61, %66 : vector<2x32xf32>
    %68 = arith.addf %63, %67 : vector<2x32xf32>
    %69 = math.tanh %68 : vector<2x32xf32>
    %cst_18 = arith.constant 1.000000e+00 : f32
    %70 = vector.broadcast %cst_18 : f32 to vector<2x32xf32>
    %71 = arith.subf %70, %62 : vector<2x32xf32>
    %72 = arith.mulf %71, %69 : vector<2x32xf32>
    %73 = arith.mulf %62, %48 : vector<2x32xf32>
    %74 = arith.addf %72, %73 : vector<2x32xf32>
    %75 = vector.extract_strided_slice %17 {offsets = [2, 0], sizes = [1, 96], strides = [1, 1]} : vector<16x96xf32> to vector<1x96xf32>
    %76 = vector.extract_strided_slice %17 {offsets = [10, 0], sizes = [1, 96], strides = [1, 1]} : vector<16x96xf32> to vector<1x96xf32>
    %77 = tpu.concatenate %75, %76 in 0 : vector<1x96xf32>, vector<1x96xf32> -> vector<2x96xf32>
    %cst_19 = arith.constant dense<0.000000e+00> : vector<2x96xf32>
    %78 = tpu.matmul %74, %5, %cst_19 {dimension_numbers = #tpu.dot_dimension_numbers<[1], [0], [0], [1], [0, 0, 1, 1], [], []>} : vector<2x32xf32>, vector<32x96xf32>, vector<2x96xf32> -> vector<2x96xf32>
    %79 = vector.extract_strided_slice %77 {offsets = [0, 0], sizes = [2, 64], strides = [1, 1]} : vector<2x96xf32> to vector<2x64xf32>
    %80 = vector.extract_strided_slice %78 {offsets = [0, 0], sizes = [2, 64], strides = [1, 1]} : vector<2x96xf32> to vector<2x64xf32>
    %81 = arith.addf %79, %80 : vector<2x64xf32>
    %82 = arith.negf %81 : vector<2x64xf32>
    %83 = math.exp %82 : vector<2x64xf32>
    %cst_20 = arith.constant 1.000000e+00 : f32
    %84 = vector.broadcast %cst_20 : f32 to vector<2x64xf32>
    %85 = arith.addf %84, %83 : vector<2x64xf32>
    %86 = arith.divf %84, %85 : vector<2x64xf32>
    %87 = vector.extract_strided_slice %86 {offsets = [0, 0], sizes = [2, 32], strides = [1, 1]} : vector<2x64xf32> to vector<2x32xf32>
    %88 = vector.extract_strided_slice %86 {offsets = [0, 32], sizes = [2, 32], strides = [1, 1]} : vector<2x64xf32> to vector<2x32xf32>
    %89 = vector.extract_strided_slice %77 {offsets = [0, 64], sizes = [2, 32], strides = [1, 1]} : vector<2x96xf32> to vector<2x32xf32>
    %90 = vector.extract_strided_slice %78 {offsets = [0, 64], sizes = [2, 32], strides = [1, 1]} : vector<2x96xf32> to vector<2x32xf32>
    %91 = vector.broadcast %4 : vector<1x32xf32> to vector<2x32xf32>
    %92 = arith.addf %90, %91 : vector<2x32xf32>
    %93 = arith.mulf %87, %92 : vector<2x32xf32>
    %94 = arith.addf %89, %93 : vector<2x32xf32>
    %95 = math.tanh %94 : vector<2x32xf32>
    %cst_21 = arith.constant 1.000000e+00 : f32
    %96 = vector.broadcast %cst_21 : f32 to vector<2x32xf32>
    %97 = arith.subf %96, %88 : vector<2x32xf32>
    %98 = arith.mulf %97, %95 : vector<2x32xf32>
    %99 = arith.mulf %88, %74 : vector<2x32xf32>
    %100 = arith.addf %98, %99 : vector<2x32xf32>
    %101 = vector.extract_strided_slice %17 {offsets = [3, 0], sizes = [1, 96], strides = [1, 1]} : vector<16x96xf32> to vector<1x96xf32>
    %102 = vector.extract_strided_slice %17 {offsets = [11, 0], sizes = [1, 96], strides = [1, 1]} : vector<16x96xf32> to vector<1x96xf32>
    %103 = tpu.concatenate %101, %102 in 0 : vector<1x96xf32>, vector<1x96xf32> -> vector<2x96xf32>
    %cst_22 = arith.constant dense<0.000000e+00> : vector<2x96xf32>
    %104 = tpu.matmul %100, %5, %cst_22 {dimension_numbers = #tpu.dot_dimension_numbers<[1], [0], [0], [1], [0, 0, 1, 1], [], []>} : vector<2x32xf32>, vector<32x96xf32>, vector<2x96xf32> -> vector<2x96xf32>
    %105 = vector.extract_strided_slice %103 {offsets = [0, 0], sizes = [2, 64], strides = [1, 1]} : vector<2x96xf32> to vector<2x64xf32>
    %106 = vector.extract_strided_slice %104 {offsets = [0, 0], sizes = [2, 64], strides = [1, 1]} : vector<2x96xf32> to vector<2x64xf32>
    %107 = arith.addf %105, %106 : vector<2x64xf32>
    %108 = arith.negf %107 : vector<2x64xf32>
    %109 = math.exp %108 : vector<2x64xf32>
    %cst_23 = arith.constant 1.000000e+00 : f32
    %110 = vector.broadcast %cst_23 : f32 to vector<2x64xf32>
    %111 = arith.addf %110, %109 : vector<2x64xf32>
    %112 = arith.divf %110, %111 : vector<2x64xf32>
    %113 = vector.extract_strided_slice %112 {offsets = [0, 0], sizes = [2, 32], strides = [1, 1]} : vector<2x64xf32> to vector<2x32xf32>
    %114 = vector.extract_strided_slice %112 {offsets = [0, 32], sizes = [2, 32], strides = [1, 1]} : vector<2x64xf32> to vector<2x32xf32>
    %115 = vector.extract_strided_slice %103 {offsets = [0, 64], sizes = [2, 32], strides = [1, 1]} : vector<2x96xf32> to vector<2x32xf32>
    %116 = vector.extract_strided_slice %104 {offsets = [0, 64], sizes = [2, 32], strides = [1, 1]} : vector<2x96xf32> to vector<2x32xf32>
    %117 = vector.broadcast %4 : vector<1x32xf32> to vector<2x32xf32>
    %118 = arith.addf %116, %117 : vector<2x32xf32>
    %119 = arith.mulf %113, %118 : vector<2x32xf32>
    %120 = arith.addf %115, %119 : vector<2x32xf32>
    %121 = math.tanh %120 : vector<2x32xf32>
    %cst_24 = arith.constant 1.000000e+00 : f32
    %122 = vector.broadcast %cst_24 : f32 to vector<2x32xf32>
    %123 = arith.subf %122, %114 : vector<2x32xf32>
    %124 = arith.mulf %123, %121 : vector<2x32xf32>
    %125 = arith.mulf %114, %100 : vector<2x32xf32>
    %126 = arith.addf %124, %125 : vector<2x32xf32>
    %127 = vector.extract_strided_slice %17 {offsets = [4, 0], sizes = [1, 96], strides = [1, 1]} : vector<16x96xf32> to vector<1x96xf32>
    %128 = vector.extract_strided_slice %17 {offsets = [12, 0], sizes = [1, 96], strides = [1, 1]} : vector<16x96xf32> to vector<1x96xf32>
    %129 = tpu.concatenate %127, %128 in 0 : vector<1x96xf32>, vector<1x96xf32> -> vector<2x96xf32>
    %cst_25 = arith.constant dense<0.000000e+00> : vector<2x96xf32>
    %130 = tpu.matmul %126, %5, %cst_25 {dimension_numbers = #tpu.dot_dimension_numbers<[1], [0], [0], [1], [0, 0, 1, 1], [], []>} : vector<2x32xf32>, vector<32x96xf32>, vector<2x96xf32> -> vector<2x96xf32>
    %131 = vector.extract_strided_slice %129 {offsets = [0, 0], sizes = [2, 64], strides = [1, 1]} : vector<2x96xf32> to vector<2x64xf32>
    %132 = vector.extract_strided_slice %130 {offsets = [0, 0], sizes = [2, 64], strides = [1, 1]} : vector<2x96xf32> to vector<2x64xf32>
    %133 = arith.addf %131, %132 : vector<2x64xf32>
    %134 = arith.negf %133 : vector<2x64xf32>
    %135 = math.exp %134 : vector<2x64xf32>
    %cst_26 = arith.constant 1.000000e+00 : f32
    %136 = vector.broadcast %cst_26 : f32 to vector<2x64xf32>
    %137 = arith.addf %136, %135 : vector<2x64xf32>
    %138 = arith.divf %136, %137 : vector<2x64xf32>
    %139 = vector.extract_strided_slice %138 {offsets = [0, 0], sizes = [2, 32], strides = [1, 1]} : vector<2x64xf32> to vector<2x32xf32>
    %140 = vector.extract_strided_slice %138 {offsets = [0, 32], sizes = [2, 32], strides = [1, 1]} : vector<2x64xf32> to vector<2x32xf32>
    %141 = vector.extract_strided_slice %129 {offsets = [0, 64], sizes = [2, 32], strides = [1, 1]} : vector<2x96xf32> to vector<2x32xf32>
    %142 = vector.extract_strided_slice %130 {offsets = [0, 64], sizes = [2, 32], strides = [1, 1]} : vector<2x96xf32> to vector<2x32xf32>
    %143 = vector.broadcast %4 : vector<1x32xf32> to vector<2x32xf32>
    %144 = arith.addf %142, %143 : vector<2x32xf32>
    %145 = arith.mulf %139, %144 : vector<2x32xf32>
    %146 = arith.addf %141, %145 : vector<2x32xf32>
    %147 = math.tanh %146 : vector<2x32xf32>
    %cst_27 = arith.constant 1.000000e+00 : f32
    %148 = vector.broadcast %cst_27 : f32 to vector<2x32xf32>
    %149 = arith.subf %148, %140 : vector<2x32xf32>
    %150 = arith.mulf %149, %147 : vector<2x32xf32>
    %151 = arith.mulf %140, %126 : vector<2x32xf32>
    %152 = arith.addf %150, %151 : vector<2x32xf32>
    %153 = vector.extract_strided_slice %17 {offsets = [5, 0], sizes = [1, 96], strides = [1, 1]} : vector<16x96xf32> to vector<1x96xf32>
    %154 = vector.extract_strided_slice %17 {offsets = [13, 0], sizes = [1, 96], strides = [1, 1]} : vector<16x96xf32> to vector<1x96xf32>
    %155 = tpu.concatenate %153, %154 in 0 : vector<1x96xf32>, vector<1x96xf32> -> vector<2x96xf32>
    %cst_28 = arith.constant dense<0.000000e+00> : vector<2x96xf32>
    %156 = tpu.matmul %152, %5, %cst_28 {dimension_numbers = #tpu.dot_dimension_numbers<[1], [0], [0], [1], [0, 0, 1, 1], [], []>} : vector<2x32xf32>, vector<32x96xf32>, vector<2x96xf32> -> vector<2x96xf32>
    %157 = vector.extract_strided_slice %155 {offsets = [0, 0], sizes = [2, 64], strides = [1, 1]} : vector<2x96xf32> to vector<2x64xf32>
    %158 = vector.extract_strided_slice %156 {offsets = [0, 0], sizes = [2, 64], strides = [1, 1]} : vector<2x96xf32> to vector<2x64xf32>
    %159 = arith.addf %157, %158 : vector<2x64xf32>
    %160 = arith.negf %159 : vector<2x64xf32>
    %161 = math.exp %160 : vector<2x64xf32>
    %cst_29 = arith.constant 1.000000e+00 : f32
    %162 = vector.broadcast %cst_29 : f32 to vector<2x64xf32>
    %163 = arith.addf %162, %161 : vector<2x64xf32>
    %164 = arith.divf %162, %163 : vector<2x64xf32>
    %165 = vector.extract_strided_slice %164 {offsets = [0, 0], sizes = [2, 32], strides = [1, 1]} : vector<2x64xf32> to vector<2x32xf32>
    %166 = vector.extract_strided_slice %164 {offsets = [0, 32], sizes = [2, 32], strides = [1, 1]} : vector<2x64xf32> to vector<2x32xf32>
    %167 = vector.extract_strided_slice %155 {offsets = [0, 64], sizes = [2, 32], strides = [1, 1]} : vector<2x96xf32> to vector<2x32xf32>
    %168 = vector.extract_strided_slice %156 {offsets = [0, 64], sizes = [2, 32], strides = [1, 1]} : vector<2x96xf32> to vector<2x32xf32>
    %169 = vector.broadcast %4 : vector<1x32xf32> to vector<2x32xf32>
    %170 = arith.addf %168, %169 : vector<2x32xf32>
    %171 = arith.mulf %165, %170 : vector<2x32xf32>
    %172 = arith.addf %167, %171 : vector<2x32xf32>
    %173 = math.tanh %172 : vector<2x32xf32>
    %cst_30 = arith.constant 1.000000e+00 : f32
    %174 = vector.broadcast %cst_30 : f32 to vector<2x32xf32>
    %175 = arith.subf %174, %166 : vector<2x32xf32>
    %176 = arith.mulf %175, %173 : vector<2x32xf32>
    %177 = arith.mulf %166, %152 : vector<2x32xf32>
    %178 = arith.addf %176, %177 : vector<2x32xf32>
    %179 = vector.extract_strided_slice %17 {offsets = [6, 0], sizes = [1, 96], strides = [1, 1]} : vector<16x96xf32> to vector<1x96xf32>
    %180 = vector.extract_strided_slice %17 {offsets = [14, 0], sizes = [1, 96], strides = [1, 1]} : vector<16x96xf32> to vector<1x96xf32>
    %181 = tpu.concatenate %179, %180 in 0 : vector<1x96xf32>, vector<1x96xf32> -> vector<2x96xf32>
    %cst_31 = arith.constant dense<0.000000e+00> : vector<2x96xf32>
    %182 = tpu.matmul %178, %5, %cst_31 {dimension_numbers = #tpu.dot_dimension_numbers<[1], [0], [0], [1], [0, 0, 1, 1], [], []>} : vector<2x32xf32>, vector<32x96xf32>, vector<2x96xf32> -> vector<2x96xf32>
    %183 = vector.extract_strided_slice %181 {offsets = [0, 0], sizes = [2, 64], strides = [1, 1]} : vector<2x96xf32> to vector<2x64xf32>
    %184 = vector.extract_strided_slice %182 {offsets = [0, 0], sizes = [2, 64], strides = [1, 1]} : vector<2x96xf32> to vector<2x64xf32>
    %185 = arith.addf %183, %184 : vector<2x64xf32>
    %186 = arith.negf %185 : vector<2x64xf32>
    %187 = math.exp %186 : vector<2x64xf32>
    %cst_32 = arith.constant 1.000000e+00 : f32
    %188 = vector.broadcast %cst_32 : f32 to vector<2x64xf32>
    %189 = arith.addf %188, %187 : vector<2x64xf32>
    %190 = arith.divf %188, %189 : vector<2x64xf32>
    %191 = vector.extract_strided_slice %190 {offsets = [0, 0], sizes = [2, 32], strides = [1, 1]} : vector<2x64xf32> to vector<2x32xf32>
    %192 = vector.extract_strided_slice %190 {offsets = [0, 32], sizes = [2, 32], strides = [1, 1]} : vector<2x64xf32> to vector<2x32xf32>
    %193 = vector.extract_strided_slice %181 {offsets = [0, 64], sizes = [2, 32], strides = [1, 1]} : vector<2x96xf32> to vector<2x32xf32>
    %194 = vector.extract_strided_slice %182 {offsets = [0, 64], sizes = [2, 32], strides = [1, 1]} : vector<2x96xf32> to vector<2x32xf32>
    %195 = vector.broadcast %4 : vector<1x32xf32> to vector<2x32xf32>
    %196 = arith.addf %194, %195 : vector<2x32xf32>
    %197 = arith.mulf %191, %196 : vector<2x32xf32>
    %198 = arith.addf %193, %197 : vector<2x32xf32>
    %199 = math.tanh %198 : vector<2x32xf32>
    %cst_33 = arith.constant 1.000000e+00 : f32
    %200 = vector.broadcast %cst_33 : f32 to vector<2x32xf32>
    %201 = arith.subf %200, %192 : vector<2x32xf32>
    %202 = arith.mulf %201, %199 : vector<2x32xf32>
    %203 = arith.mulf %192, %178 : vector<2x32xf32>
    %204 = arith.addf %202, %203 : vector<2x32xf32>
    %205 = vector.extract_strided_slice %17 {offsets = [7, 0], sizes = [1, 96], strides = [1, 1]} : vector<16x96xf32> to vector<1x96xf32>
    %206 = vector.extract_strided_slice %17 {offsets = [15, 0], sizes = [1, 96], strides = [1, 1]} : vector<16x96xf32> to vector<1x96xf32>
    %207 = tpu.concatenate %205, %206 in 0 : vector<1x96xf32>, vector<1x96xf32> -> vector<2x96xf32>
    %cst_34 = arith.constant dense<0.000000e+00> : vector<2x96xf32>
    %208 = tpu.matmul %204, %5, %cst_34 {dimension_numbers = #tpu.dot_dimension_numbers<[1], [0], [0], [1], [0, 0, 1, 1], [], []>} : vector<2x32xf32>, vector<32x96xf32>, vector<2x96xf32> -> vector<2x96xf32>
    %209 = vector.extract_strided_slice %207 {offsets = [0, 0], sizes = [2, 64], strides = [1, 1]} : vector<2x96xf32> to vector<2x64xf32>
    %210 = vector.extract_strided_slice %208 {offsets = [0, 0], sizes = [2, 64], strides = [1, 1]} : vector<2x96xf32> to vector<2x64xf32>
    %211 = arith.addf %209, %210 : vector<2x64xf32>
    %212 = arith.negf %211 : vector<2x64xf32>
    %213 = math.exp %212 : vector<2x64xf32>
    %cst_35 = arith.constant 1.000000e+00 : f32
    %214 = vector.broadcast %cst_35 : f32 to vector<2x64xf32>
    %215 = arith.addf %214, %213 : vector<2x64xf32>
    %216 = arith.divf %214, %215 : vector<2x64xf32>
    %217 = vector.extract_strided_slice %216 {offsets = [0, 0], sizes = [2, 32], strides = [1, 1]} : vector<2x64xf32> to vector<2x32xf32>
    %218 = vector.extract_strided_slice %216 {offsets = [0, 32], sizes = [2, 32], strides = [1, 1]} : vector<2x64xf32> to vector<2x32xf32>
    %219 = vector.extract_strided_slice %207 {offsets = [0, 64], sizes = [2, 32], strides = [1, 1]} : vector<2x96xf32> to vector<2x32xf32>
    %220 = vector.extract_strided_slice %208 {offsets = [0, 64], sizes = [2, 32], strides = [1, 1]} : vector<2x96xf32> to vector<2x32xf32>
    %221 = vector.broadcast %4 : vector<1x32xf32> to vector<2x32xf32>
    %222 = arith.addf %220, %221 : vector<2x32xf32>
    %223 = arith.mulf %217, %222 : vector<2x32xf32>
    %224 = arith.addf %219, %223 : vector<2x32xf32>
    %225 = math.tanh %224 : vector<2x32xf32>
    %cst_36 = arith.constant 1.000000e+00 : f32
    %226 = vector.broadcast %cst_36 : f32 to vector<2x32xf32>
    %227 = arith.subf %226, %218 : vector<2x32xf32>
    %228 = arith.mulf %227, %225 : vector<2x32xf32>
    %229 = arith.mulf %218, %204 : vector<2x32xf32>
    %230 = arith.addf %228, %229 : vector<2x32xf32>
    %c0_37 = arith.constant 0 : index
    %c0_38 = arith.constant 0 : index
    %231 = vector.load %arg2[%c0_37, %c0_38] : memref<2x32xf32, #tpu.memory_space<vmem>>, vector<2x32xf32>
    %232 = arith.addf %230, %231 : vector<2x32xf32>
    %cst_39 = arith.constant dense<0.000000e+00> : vector<2x96xf32>
    %233 = tpu.matmul %232, %11, %cst_39 {dimension_numbers = #tpu.dot_dimension_numbers<[1], [0], [0], [1], [0, 0, 1, 1], [], []>} : vector<2x32xf32>, vector<32x96xf32>, vector<2x96xf32> -> vector<2x96xf32>
    %234 = vector.extract_strided_slice %9 {offsets = [0, 0], sizes = [1, 64], strides = [1, 1]} : vector<1x96xf32> to vector<1x64xf32>
    %235 = vector.extract_strided_slice %233 {offsets = [0, 0], sizes = [2, 64], strides = [1, 1]} : vector<2x96xf32> to vector<2x64xf32>
    %236 = vector.broadcast %234 : vector<1x64xf32> to vector<2x64xf32>
    %237 = arith.addf %236, %235 : vector<2x64xf32>
    %238 = arith.negf %237 : vector<2x64xf32>
    %239 = math.exp %238 : vector<2x64xf32>
    %cst_40 = arith.constant 1.000000e+00 : f32
    %240 = vector.broadcast %cst_40 : f32 to vector<2x64xf32>
    %241 = arith.addf %240, %239 : vector<2x64xf32>
    %242 = arith.divf %240, %241 : vector<2x64xf32>
    %243 = vector.extract_strided_slice %242 {offsets = [0, 0], sizes = [2, 32], strides = [1, 1]} : vector<2x64xf32> to vector<2x32xf32>
    %244 = vector.extract_strided_slice %242 {offsets = [0, 32], sizes = [2, 32], strides = [1, 1]} : vector<2x64xf32> to vector<2x32xf32>
    %245 = vector.extract_strided_slice %9 {offsets = [0, 64], sizes = [1, 32], strides = [1, 1]} : vector<1x96xf32> to vector<1x32xf32>
    %246 = vector.extract_strided_slice %233 {offsets = [0, 64], sizes = [2, 32], strides = [1, 1]} : vector<2x96xf32> to vector<2x32xf32>
    %247 = vector.broadcast %10 : vector<1x32xf32> to vector<2x32xf32>
    %248 = arith.addf %246, %247 : vector<2x32xf32>
    %249 = arith.mulf %243, %248 : vector<2x32xf32>
    %250 = vector.broadcast %245 : vector<1x32xf32> to vector<2x32xf32>
    %251 = arith.addf %250, %249 : vector<2x32xf32>
    %252 = math.tanh %251 : vector<2x32xf32>
    %cst_41 = arith.constant 1.000000e+00 : f32
    %253 = vector.broadcast %cst_41 : f32 to vector<2x32xf32>
    %254 = arith.subf %253, %244 : vector<2x32xf32>
    %255 = arith.mulf %254, %252 : vector<2x32xf32>
    %256 = arith.mulf %244, %232 : vector<2x32xf32>
    %257 = arith.addf %255, %256 : vector<2x32xf32>
    %258 = vector.extract_strided_slice %21 {offsets = [0, 0], sizes = [1, 96], strides = [1, 1]} : vector<16x96xf32> to vector<1x96xf32>
    %259 = vector.extract_strided_slice %21 {offsets = [8, 0], sizes = [1, 96], strides = [1, 1]} : vector<16x96xf32> to vector<1x96xf32>
    %260 = tpu.concatenate %258, %259 in 0 : vector<1x96xf32>, vector<1x96xf32> -> vector<2x96xf32>
    %cst_42 = arith.constant dense<0.000000e+00> : vector<2x96xf32>
    %261 = tpu.matmul %257, %11, %cst_42 {dimension_numbers = #tpu.dot_dimension_numbers<[1], [0], [0], [1], [0, 0, 1, 1], [], []>} : vector<2x32xf32>, vector<32x96xf32>, vector<2x96xf32> -> vector<2x96xf32>
    %262 = vector.extract_strided_slice %260 {offsets = [0, 0], sizes = [2, 64], strides = [1, 1]} : vector<2x96xf32> to vector<2x64xf32>
    %263 = vector.extract_strided_slice %261 {offsets = [0, 0], sizes = [2, 64], strides = [1, 1]} : vector<2x96xf32> to vector<2x64xf32>
    %264 = arith.addf %262, %263 : vector<2x64xf32>
    %265 = arith.negf %264 : vector<2x64xf32>
    %266 = math.exp %265 : vector<2x64xf32>
    %cst_43 = arith.constant 1.000000e+00 : f32
    %267 = vector.broadcast %cst_43 : f32 to vector<2x64xf32>
    %268 = arith.addf %267, %266 : vector<2x64xf32>
    %269 = arith.divf %267, %268 : vector<2x64xf32>
    %270 = vector.extract_strided_slice %269 {offsets = [0, 0], sizes = [2, 32], strides = [1, 1]} : vector<2x64xf32> to vector<2x32xf32>
    %271 = vector.extract_strided_slice %269 {offsets = [0, 32], sizes = [2, 32], strides = [1, 1]} : vector<2x64xf32> to vector<2x32xf32>
    %272 = vector.extract_strided_slice %260 {offsets = [0, 64], sizes = [2, 32], strides = [1, 1]} : vector<2x96xf32> to vector<2x32xf32>
    %273 = vector.extract_strided_slice %261 {offsets = [0, 64], sizes = [2, 32], strides = [1, 1]} : vector<2x96xf32> to vector<2x32xf32>
    %274 = vector.broadcast %10 : vector<1x32xf32> to vector<2x32xf32>
    %275 = arith.addf %273, %274 : vector<2x32xf32>
    %276 = arith.mulf %270, %275 : vector<2x32xf32>
    %277 = arith.addf %272, %276 : vector<2x32xf32>
    %278 = math.tanh %277 : vector<2x32xf32>
    %cst_44 = arith.constant 1.000000e+00 : f32
    %279 = vector.broadcast %cst_44 : f32 to vector<2x32xf32>
    %280 = arith.subf %279, %271 : vector<2x32xf32>
    %281 = arith.mulf %280, %278 : vector<2x32xf32>
    %282 = arith.mulf %271, %257 : vector<2x32xf32>
    %283 = arith.addf %281, %282 : vector<2x32xf32>
    %284 = vector.extract_strided_slice %21 {offsets = [1, 0], sizes = [1, 96], strides = [1, 1]} : vector<16x96xf32> to vector<1x96xf32>
    %285 = vector.extract_strided_slice %21 {offsets = [9, 0], sizes = [1, 96], strides = [1, 1]} : vector<16x96xf32> to vector<1x96xf32>
    %286 = tpu.concatenate %284, %285 in 0 : vector<1x96xf32>, vector<1x96xf32> -> vector<2x96xf32>
    %cst_45 = arith.constant dense<0.000000e+00> : vector<2x96xf32>
    %287 = tpu.matmul %283, %11, %cst_45 {dimension_numbers = #tpu.dot_dimension_numbers<[1], [0], [0], [1], [0, 0, 1, 1], [], []>} : vector<2x32xf32>, vector<32x96xf32>, vector<2x96xf32> -> vector<2x96xf32>
    %288 = vector.extract_strided_slice %286 {offsets = [0, 0], sizes = [2, 64], strides = [1, 1]} : vector<2x96xf32> to vector<2x64xf32>
    %289 = vector.extract_strided_slice %287 {offsets = [0, 0], sizes = [2, 64], strides = [1, 1]} : vector<2x96xf32> to vector<2x64xf32>
    %290 = arith.addf %288, %289 : vector<2x64xf32>
    %291 = arith.negf %290 : vector<2x64xf32>
    %292 = math.exp %291 : vector<2x64xf32>
    %cst_46 = arith.constant 1.000000e+00 : f32
    %293 = vector.broadcast %cst_46 : f32 to vector<2x64xf32>
    %294 = arith.addf %293, %292 : vector<2x64xf32>
    %295 = arith.divf %293, %294 : vector<2x64xf32>
    %296 = vector.extract_strided_slice %295 {offsets = [0, 0], sizes = [2, 32], strides = [1, 1]} : vector<2x64xf32> to vector<2x32xf32>
    %297 = vector.extract_strided_slice %295 {offsets = [0, 32], sizes = [2, 32], strides = [1, 1]} : vector<2x64xf32> to vector<2x32xf32>
    %298 = vector.extract_strided_slice %286 {offsets = [0, 64], sizes = [2, 32], strides = [1, 1]} : vector<2x96xf32> to vector<2x32xf32>
    %299 = vector.extract_strided_slice %287 {offsets = [0, 64], sizes = [2, 32], strides = [1, 1]} : vector<2x96xf32> to vector<2x32xf32>
    %300 = vector.broadcast %10 : vector<1x32xf32> to vector<2x32xf32>
    %301 = arith.addf %299, %300 : vector<2x32xf32>
    %302 = arith.mulf %296, %301 : vector<2x32xf32>
    %303 = arith.addf %298, %302 : vector<2x32xf32>
    %304 = math.tanh %303 : vector<2x32xf32>
    %cst_47 = arith.constant 1.000000e+00 : f32
    %305 = vector.broadcast %cst_47 : f32 to vector<2x32xf32>
    %306 = arith.subf %305, %297 : vector<2x32xf32>
    %307 = arith.mulf %306, %304 : vector<2x32xf32>
    %308 = arith.mulf %297, %283 : vector<2x32xf32>
    %309 = arith.addf %307, %308 : vector<2x32xf32>
    %310 = vector.extract_strided_slice %21 {offsets = [2, 0], sizes = [1, 96], strides = [1, 1]} : vector<16x96xf32> to vector<1x96xf32>
    %311 = vector.extract_strided_slice %21 {offsets = [10, 0], sizes = [1, 96], strides = [1, 1]} : vector<16x96xf32> to vector<1x96xf32>
    %312 = tpu.concatenate %310, %311 in 0 : vector<1x96xf32>, vector<1x96xf32> -> vector<2x96xf32>
    %cst_48 = arith.constant dense<0.000000e+00> : vector<2x96xf32>
    %313 = tpu.matmul %309, %11, %cst_48 {dimension_numbers = #tpu.dot_dimension_numbers<[1], [0], [0], [1], [0, 0, 1, 1], [], []>} : vector<2x32xf32>, vector<32x96xf32>, vector<2x96xf32> -> vector<2x96xf32>
    %314 = vector.extract_strided_slice %312 {offsets = [0, 0], sizes = [2, 64], strides = [1, 1]} : vector<2x96xf32> to vector<2x64xf32>
    %315 = vector.extract_strided_slice %313 {offsets = [0, 0], sizes = [2, 64], strides = [1, 1]} : vector<2x96xf32> to vector<2x64xf32>
    %316 = arith.addf %314, %315 : vector<2x64xf32>
    %317 = arith.negf %316 : vector<2x64xf32>
    %318 = math.exp %317 : vector<2x64xf32>
    %cst_49 = arith.constant 1.000000e+00 : f32
    %319 = vector.broadcast %cst_49 : f32 to vector<2x64xf32>
    %320 = arith.addf %319, %318 : vector<2x64xf32>
    %321 = arith.divf %319, %320 : vector<2x64xf32>
    %322 = vector.extract_strided_slice %321 {offsets = [0, 0], sizes = [2, 32], strides = [1, 1]} : vector<2x64xf32> to vector<2x32xf32>
    %323 = vector.extract_strided_slice %321 {offsets = [0, 32], sizes = [2, 32], strides = [1, 1]} : vector<2x64xf32> to vector<2x32xf32>
    %324 = vector.extract_strided_slice %312 {offsets = [0, 64], sizes = [2, 32], strides = [1, 1]} : vector<2x96xf32> to vector<2x32xf32>
    %325 = vector.extract_strided_slice %313 {offsets = [0, 64], sizes = [2, 32], strides = [1, 1]} : vector<2x96xf32> to vector<2x32xf32>
    %326 = vector.broadcast %10 : vector<1x32xf32> to vector<2x32xf32>
    %327 = arith.addf %325, %326 : vector<2x32xf32>
    %328 = arith.mulf %322, %327 : vector<2x32xf32>
    %329 = arith.addf %324, %328 : vector<2x32xf32>
    %330 = math.tanh %329 : vector<2x32xf32>
    %cst_50 = arith.constant 1.000000e+00 : f32
    %331 = vector.broadcast %cst_50 : f32 to vector<2x32xf32>
    %332 = arith.subf %331, %323 : vector<2x32xf32>
    %333 = arith.mulf %332, %330 : vector<2x32xf32>
    %334 = arith.mulf %323, %309 : vector<2x32xf32>
    %335 = arith.addf %333, %334 : vector<2x32xf32>
    %336 = vector.extract_strided_slice %21 {offsets = [3, 0], sizes = [1, 96], strides = [1, 1]} : vector<16x96xf32> to vector<1x96xf32>
    %337 = vector.extract_strided_slice %21 {offsets = [11, 0], sizes = [1, 96], strides = [1, 1]} : vector<16x96xf32> to vector<1x96xf32>
    %338 = tpu.concatenate %336, %337 in 0 : vector<1x96xf32>, vector<1x96xf32> -> vector<2x96xf32>
    %cst_51 = arith.constant dense<0.000000e+00> : vector<2x96xf32>
    %339 = tpu.matmul %335, %11, %cst_51 {dimension_numbers = #tpu.dot_dimension_numbers<[1], [0], [0], [1], [0, 0, 1, 1], [], []>} : vector<2x32xf32>, vector<32x96xf32>, vector<2x96xf32> -> vector<2x96xf32>
    %340 = vector.extract_strided_slice %338 {offsets = [0, 0], sizes = [2, 64], strides = [1, 1]} : vector<2x96xf32> to vector<2x64xf32>
    %341 = vector.extract_strided_slice %339 {offsets = [0, 0], sizes = [2, 64], strides = [1, 1]} : vector<2x96xf32> to vector<2x64xf32>
    %342 = arith.addf %340, %341 : vector<2x64xf32>
    %343 = arith.negf %342 : vector<2x64xf32>
    %344 = math.exp %343 : vector<2x64xf32>
    %cst_52 = arith.constant 1.000000e+00 : f32
    %345 = vector.broadcast %cst_52 : f32 to vector<2x64xf32>
    %346 = arith.addf %345, %344 : vector<2x64xf32>
    %347 = arith.divf %345, %346 : vector<2x64xf32>
    %348 = vector.extract_strided_slice %347 {offsets = [0, 0], sizes = [2, 32], strides = [1, 1]} : vector<2x64xf32> to vector<2x32xf32>
    %349 = vector.extract_strided_slice %347 {offsets = [0, 32], sizes = [2, 32], strides = [1, 1]} : vector<2x64xf32> to vector<2x32xf32>
    %350 = vector.extract_strided_slice %338 {offsets = [0, 64], sizes = [2, 32], strides = [1, 1]} : vector<2x96xf32> to vector<2x32xf32>
    %351 = vector.extract_strided_slice %339 {offsets = [0, 64], sizes = [2, 32], strides = [1, 1]} : vector<2x96xf32> to vector<2x32xf32>
    %352 = vector.broadcast %10 : vector<1x32xf32> to vector<2x32xf32>
    %353 = arith.addf %351, %352 : vector<2x32xf32>
    %354 = arith.mulf %348, %353 : vector<2x32xf32>
    %355 = arith.addf %350, %354 : vector<2x32xf32>
    %356 = math.tanh %355 : vector<2x32xf32>
    %cst_53 = arith.constant 1.000000e+00 : f32
    %357 = vector.broadcast %cst_53 : f32 to vector<2x32xf32>
    %358 = arith.subf %357, %349 : vector<2x32xf32>
    %359 = arith.mulf %358, %356 : vector<2x32xf32>
    %360 = arith.mulf %349, %335 : vector<2x32xf32>
    %361 = arith.addf %359, %360 : vector<2x32xf32>
    %362 = vector.extract_strided_slice %21 {offsets = [4, 0], sizes = [1, 96], strides = [1, 1]} : vector<16x96xf32> to vector<1x96xf32>
    %363 = vector.extract_strided_slice %21 {offsets = [12, 0], sizes = [1, 96], strides = [1, 1]} : vector<16x96xf32> to vector<1x96xf32>
    %364 = tpu.concatenate %362, %363 in 0 : vector<1x96xf32>, vector<1x96xf32> -> vector<2x96xf32>
    %cst_54 = arith.constant dense<0.000000e+00> : vector<2x96xf32>
    %365 = tpu.matmul %361, %11, %cst_54 {dimension_numbers = #tpu.dot_dimension_numbers<[1], [0], [0], [1], [0, 0, 1, 1], [], []>} : vector<2x32xf32>, vector<32x96xf32>, vector<2x96xf32> -> vector<2x96xf32>
    %366 = vector.extract_strided_slice %364 {offsets = [0, 0], sizes = [2, 64], strides = [1, 1]} : vector<2x96xf32> to vector<2x64xf32>
    %367 = vector.extract_strided_slice %365 {offsets = [0, 0], sizes = [2, 64], strides = [1, 1]} : vector<2x96xf32> to vector<2x64xf32>
    %368 = arith.addf %366, %367 : vector<2x64xf32>
    %369 = arith.negf %368 : vector<2x64xf32>
    %370 = math.exp %369 : vector<2x64xf32>
    %cst_55 = arith.constant 1.000000e+00 : f32
    %371 = vector.broadcast %cst_55 : f32 to vector<2x64xf32>
    %372 = arith.addf %371, %370 : vector<2x64xf32>
    %373 = arith.divf %371, %372 : vector<2x64xf32>
    %374 = vector.extract_strided_slice %373 {offsets = [0, 0], sizes = [2, 32], strides = [1, 1]} : vector<2x64xf32> to vector<2x32xf32>
    %375 = vector.extract_strided_slice %373 {offsets = [0, 32], sizes = [2, 32], strides = [1, 1]} : vector<2x64xf32> to vector<2x32xf32>
    %376 = vector.extract_strided_slice %364 {offsets = [0, 64], sizes = [2, 32], strides = [1, 1]} : vector<2x96xf32> to vector<2x32xf32>
    %377 = vector.extract_strided_slice %365 {offsets = [0, 64], sizes = [2, 32], strides = [1, 1]} : vector<2x96xf32> to vector<2x32xf32>
    %378 = vector.broadcast %10 : vector<1x32xf32> to vector<2x32xf32>
    %379 = arith.addf %377, %378 : vector<2x32xf32>
    %380 = arith.mulf %374, %379 : vector<2x32xf32>
    %381 = arith.addf %376, %380 : vector<2x32xf32>
    %382 = math.tanh %381 : vector<2x32xf32>
    %cst_56 = arith.constant 1.000000e+00 : f32
    %383 = vector.broadcast %cst_56 : f32 to vector<2x32xf32>
    %384 = arith.subf %383, %375 : vector<2x32xf32>
    %385 = arith.mulf %384, %382 : vector<2x32xf32>
    %386 = arith.mulf %375, %361 : vector<2x32xf32>
    %387 = arith.addf %385, %386 : vector<2x32xf32>
    %388 = vector.extract_strided_slice %21 {offsets = [5, 0], sizes = [1, 96], strides = [1, 1]} : vector<16x96xf32> to vector<1x96xf32>
    %389 = vector.extract_strided_slice %21 {offsets = [13, 0], sizes = [1, 96], strides = [1, 1]} : vector<16x96xf32> to vector<1x96xf32>
    %390 = tpu.concatenate %388, %389 in 0 : vector<1x96xf32>, vector<1x96xf32> -> vector<2x96xf32>
    %cst_57 = arith.constant dense<0.000000e+00> : vector<2x96xf32>
    %391 = tpu.matmul %387, %11, %cst_57 {dimension_numbers = #tpu.dot_dimension_numbers<[1], [0], [0], [1], [0, 0, 1, 1], [], []>} : vector<2x32xf32>, vector<32x96xf32>, vector<2x96xf32> -> vector<2x96xf32>
    %392 = vector.extract_strided_slice %390 {offsets = [0, 0], sizes = [2, 64], strides = [1, 1]} : vector<2x96xf32> to vector<2x64xf32>
    %393 = vector.extract_strided_slice %391 {offsets = [0, 0], sizes = [2, 64], strides = [1, 1]} : vector<2x96xf32> to vector<2x64xf32>
    %394 = arith.addf %392, %393 : vector<2x64xf32>
    %395 = arith.negf %394 : vector<2x64xf32>
    %396 = math.exp %395 : vector<2x64xf32>
    %cst_58 = arith.constant 1.000000e+00 : f32
    %397 = vector.broadcast %cst_58 : f32 to vector<2x64xf32>
    %398 = arith.addf %397, %396 : vector<2x64xf32>
    %399 = arith.divf %397, %398 : vector<2x64xf32>
    %400 = vector.extract_strided_slice %399 {offsets = [0, 0], sizes = [2, 32], strides = [1, 1]} : vector<2x64xf32> to vector<2x32xf32>
    %401 = vector.extract_strided_slice %399 {offsets = [0, 32], sizes = [2, 32], strides = [1, 1]} : vector<2x64xf32> to vector<2x32xf32>
    %402 = vector.extract_strided_slice %390 {offsets = [0, 64], sizes = [2, 32], strides = [1, 1]} : vector<2x96xf32> to vector<2x32xf32>
    %403 = vector.extract_strided_slice %391 {offsets = [0, 64], sizes = [2, 32], strides = [1, 1]} : vector<2x96xf32> to vector<2x32xf32>
    %404 = vector.broadcast %10 : vector<1x32xf32> to vector<2x32xf32>
    %405 = arith.addf %403, %404 : vector<2x32xf32>
    %406 = arith.mulf %400, %405 : vector<2x32xf32>
    %407 = arith.addf %402, %406 : vector<2x32xf32>
    %408 = math.tanh %407 : vector<2x32xf32>
    %cst_59 = arith.constant 1.000000e+00 : f32
    %409 = vector.broadcast %cst_59 : f32 to vector<2x32xf32>
    %410 = arith.subf %409, %401 : vector<2x32xf32>
    %411 = arith.mulf %410, %408 : vector<2x32xf32>
    %412 = arith.mulf %401, %387 : vector<2x32xf32>
    %413 = arith.addf %411, %412 : vector<2x32xf32>
    %414 = vector.extract_strided_slice %21 {offsets = [6, 0], sizes = [1, 96], strides = [1, 1]} : vector<16x96xf32> to vector<1x96xf32>
    %415 = vector.extract_strided_slice %21 {offsets = [14, 0], sizes = [1, 96], strides = [1, 1]} : vector<16x96xf32> to vector<1x96xf32>
    %416 = tpu.concatenate %414, %415 in 0 : vector<1x96xf32>, vector<1x96xf32> -> vector<2x96xf32>
    %cst_60 = arith.constant dense<0.000000e+00> : vector<2x96xf32>
    %417 = tpu.matmul %413, %11, %cst_60 {dimension_numbers = #tpu.dot_dimension_numbers<[1], [0], [0], [1], [0, 0, 1, 1], [], []>} : vector<2x32xf32>, vector<32x96xf32>, vector<2x96xf32> -> vector<2x96xf32>
    %418 = vector.extract_strided_slice %416 {offsets = [0, 0], sizes = [2, 64], strides = [1, 1]} : vector<2x96xf32> to vector<2x64xf32>
    %419 = vector.extract_strided_slice %417 {offsets = [0, 0], sizes = [2, 64], strides = [1, 1]} : vector<2x96xf32> to vector<2x64xf32>
    %420 = arith.addf %418, %419 : vector<2x64xf32>
    %421 = arith.negf %420 : vector<2x64xf32>
    %422 = math.exp %421 : vector<2x64xf32>
    %cst_61 = arith.constant 1.000000e+00 : f32
    %423 = vector.broadcast %cst_61 : f32 to vector<2x64xf32>
    %424 = arith.addf %423, %422 : vector<2x64xf32>
    %425 = arith.divf %423, %424 : vector<2x64xf32>
    %426 = vector.extract_strided_slice %425 {offsets = [0, 0], sizes = [2, 32], strides = [1, 1]} : vector<2x64xf32> to vector<2x32xf32>
    %427 = vector.extract_strided_slice %425 {offsets = [0, 32], sizes = [2, 32], strides = [1, 1]} : vector<2x64xf32> to vector<2x32xf32>
    %428 = vector.extract_strided_slice %416 {offsets = [0, 64], sizes = [2, 32], strides = [1, 1]} : vector<2x96xf32> to vector<2x32xf32>
    %429 = vector.extract_strided_slice %417 {offsets = [0, 64], sizes = [2, 32], strides = [1, 1]} : vector<2x96xf32> to vector<2x32xf32>
    %430 = vector.broadcast %10 : vector<1x32xf32> to vector<2x32xf32>
    %431 = arith.addf %429, %430 : vector<2x32xf32>
    %432 = arith.mulf %426, %431 : vector<2x32xf32>
    %433 = arith.addf %428, %432 : vector<2x32xf32>
    %434 = math.tanh %433 : vector<2x32xf32>
    %cst_62 = arith.constant 1.000000e+00 : f32
    %435 = vector.broadcast %cst_62 : f32 to vector<2x32xf32>
    %436 = arith.subf %435, %427 : vector<2x32xf32>
    %437 = arith.mulf %436, %434 : vector<2x32xf32>
    %438 = arith.mulf %427, %413 : vector<2x32xf32>
    %439 = arith.addf %437, %438 : vector<2x32xf32>
    %440 = vector.extract_strided_slice %257 {offsets = [0, 0], sizes = [1, 32], strides = [1, 1]} : vector<2x32xf32> to vector<1x32xf32>
    %441 = vector.extract_strided_slice %283 {offsets = [0, 0], sizes = [1, 32], strides = [1, 1]} : vector<2x32xf32> to vector<1x32xf32>
    %442 = vector.extract_strided_slice %309 {offsets = [0, 0], sizes = [1, 32], strides = [1, 1]} : vector<2x32xf32> to vector<1x32xf32>
    %443 = vector.extract_strided_slice %335 {offsets = [0, 0], sizes = [1, 32], strides = [1, 1]} : vector<2x32xf32> to vector<1x32xf32>
    %444 = vector.extract_strided_slice %361 {offsets = [0, 0], sizes = [1, 32], strides = [1, 1]} : vector<2x32xf32> to vector<1x32xf32>
    %445 = vector.extract_strided_slice %387 {offsets = [0, 0], sizes = [1, 32], strides = [1, 1]} : vector<2x32xf32> to vector<1x32xf32>
    %446 = vector.extract_strided_slice %413 {offsets = [0, 0], sizes = [1, 32], strides = [1, 1]} : vector<2x32xf32> to vector<1x32xf32>
    %447 = vector.extract_strided_slice %439 {offsets = [0, 0], sizes = [1, 32], strides = [1, 1]} : vector<2x32xf32> to vector<1x32xf32>
    %448 = vector.extract_strided_slice %257 {offsets = [1, 0], sizes = [1, 32], strides = [1, 1]} : vector<2x32xf32> to vector<1x32xf32>
    %449 = vector.extract_strided_slice %283 {offsets = [1, 0], sizes = [1, 32], strides = [1, 1]} : vector<2x32xf32> to vector<1x32xf32>
    %450 = vector.extract_strided_slice %309 {offsets = [1, 0], sizes = [1, 32], strides = [1, 1]} : vector<2x32xf32> to vector<1x32xf32>
    %451 = vector.extract_strided_slice %335 {offsets = [1, 0], sizes = [1, 32], strides = [1, 1]} : vector<2x32xf32> to vector<1x32xf32>
    %452 = vector.extract_strided_slice %361 {offsets = [1, 0], sizes = [1, 32], strides = [1, 1]} : vector<2x32xf32> to vector<1x32xf32>
    %453 = vector.extract_strided_slice %387 {offsets = [1, 0], sizes = [1, 32], strides = [1, 1]} : vector<2x32xf32> to vector<1x32xf32>
    %454 = vector.extract_strided_slice %413 {offsets = [1, 0], sizes = [1, 32], strides = [1, 1]} : vector<2x32xf32> to vector<1x32xf32>
    %455 = vector.extract_strided_slice %439 {offsets = [1, 0], sizes = [1, 32], strides = [1, 1]} : vector<2x32xf32> to vector<1x32xf32>
    %456 = tpu.concatenate %440, %441, %442, %443, %444, %445, %446, %447, %448, %449, %450, %451, %452, %453, %454, %455 in 0 : vector<1x32xf32>, vector<1x32xf32>, vector<1x32xf32>, vector<1x32xf32>, vector<1x32xf32>, vector<1x32xf32>, vector<1x32xf32>, vector<1x32xf32>, vector<1x32xf32>, vector<1x32xf32>, vector<1x32xf32>, vector<1x32xf32>, vector<1x32xf32>, vector<1x32xf32>, vector<1x32xf32>, vector<1x32xf32> -> vector<16x32xf32>
    %cst_63 = arith.constant dense<0.000000e+00> : vector<16x4xf32>
    %457 = tpu.matmul %456, %12, %cst_63 {dimension_numbers = #tpu.dot_dimension_numbers<[1], [0], [0], [1], [0, 0, 1, 1], [], []>} : vector<16x32xf32>, vector<32x4xf32>, vector<16x4xf32> -> vector<16x4xf32>
    %458 = vector.broadcast %13 : vector<1x4xf32> to vector<16x4xf32>
    %459 = arith.addf %457, %458 : vector<16x4xf32>
    %c0_64 = arith.constant 0 : index
    %c0_65 = arith.constant 0 : index
    %460 = vector.load %arg5[%c0_64, %c0_65] : memref<16x4xf32, #tpu.memory_space<vmem>>, vector<16x4xf32>
    tpu.vector_store %arg5[%c0_64, %c0_65], %459 {strides = array<i32>} : memref<16x4xf32, #tpu.memory_space<vmem>>, vector<16x4xf32>,
    return
  }
}

</mosaic_0001>

<llo_original>
// kernel: netg_forward.1
$region0: #{netg_forward.1}
  #allocation0 [shape = 'u32[]', space=smem, size = 0x4, offset = 0x4, fixed_abs, tag = 'smem constant byte address 0x4 - core index']
  #allocation1 [shape = 'u32[72,128]{1,0:T(1,128)}', space=vmem, size = 0x9000, scoped, tag = 'internal scratch']
  %s0 = inlined_call_operand.vmem [shape: f32[16,4], index: 0, kind: input, shape index: {}]
  %s1 = inlined_call_operand.vmem [shape: f32[16,4], index: 1, kind: input, shape index: {}]
  %s2 = inlined_call_operand.vmem [shape: f32[2,32], index: 2, kind: input, shape index: {}]
  %s3 = inlined_call_operand.hbm [shape: f32[2,40,96], index: 3, kind: input, shape index: {}]
  %s4 = inlined_call_operand.vmem [shape: f32[33,4], index: 4, kind: input, shape index: {}]
  %s5 = inlined_call_operand.vmem [shape: f32[16,4], index: 5, kind: output, shape index: {}]
  %s6 = sld [smem:[#allocation0]]
  $region34: #{netg_forward.1} parent=0
    _
  %s8 = ssub.s32 1, %s6
  %s9 = scalar_select 0, %s8, %s6
  $region1: #{netg_forward.1} parent=0
    #allocation2 [shape = 'u8[40960]{0}', space=vmem, size = 0xa000, scoped, tag = 'input window, operand 3, single buffered']
    #allocation3 [shape = 's32[1]{0}', space=sflag, size = 0x4, scoped, tag = 'scoped memory for netg_forward.1']
    %10 = vsyncpa [#allocation3], 0
    // Predicated region
    $region2: #{netg_forward.1} parent=1 // pred_check
      _
    $region3: #{netg_forward.1} parent=1 // pred_check_branch
      %12 = sbr.rel (0) target = $region5
    $region4: #{netg_forward.1} parent=1 // pred_region
      _
    $region5: #{netg_forward.1} parent=1 // pred_fallthru
      _
    // Predicated region
    $region6: #{netg_forward.1} parent=1 // pred_check
      _
    $region7: #{netg_forward.1} parent=1 // pred_check_branch
      %14 = sbr.rel (0) target = $region9
    $region8: #{netg_forward.1} parent=1 // pred_region
      _
    $region9: #{netg_forward.1} parent=1 // pred_fallthru
      _
    // Predicated region
    $region10: #{netg_forward.1} parent=1 // pred_check
      _
    $region11: #{netg_forward.1} parent=1 // pred_check_branch
      %16 = sbr.rel (0) target = $region13
    $region12: #{netg_forward.1} parent=1 // pred_region
      _
    $region13: #{netg_forward.1} parent=1 // pred_fallthru
      _
    // Predicated region
    $region14: #{netg_forward.1} parent=1 // pred_check
      _
    $region15: #{netg_forward.1} parent=1 // pred_check_branch
      %18 = sbr.rel (0) target = $region17
    $region16: #{netg_forward.1} parent=1 // pred_region
      %20 = vsyncadd [#allocation3], 0
      %s21 = sshll.u32 %s3, 4
      %s22 = int_to_ptr.hbm [resolvable:$true] %s21
      %s23 = sshll.u32 [#allocation2], 4
      %s24 = int_to_ptr.vmem [resolvable:$true] %s23
      %29 = dma.hbm_to_vmem [thread:$0]  %s22, 1280, %s24, [#allocation3], 128, 128, 8
    $region17: #{netg_forward.1} parent=1 // pred_fallthru
      _
    // Predicated region
    $region18: #{netg_forward.1} parent=1 // pred_check
      _
    $region19: #{netg_forward.1} parent=1 // pred_check_branch
      %31 = sbr.rel (0) target = $region21
    $region20: #{netg_forward.1} parent=1 // pred_region
      _
    $region21: #{netg_forward.1} parent=1 // pred_fallthru
      _
    // Predicated region
    $region22: #{netg_forward.1} parent=1 // pred_check
      _
    $region23: #{netg_forward.1} parent=1 // pred_check_branch
      %33 = sbr.rel (0) target = $region25
    $region24: #{netg_forward.1} parent=1 // pred_region
      %35 = dma.done [#allocation3], 1280
    $region25: #{netg_forward.1} parent=1 // pred_fallthru
      _
    %v36 = vld [vmem:[#allocation2] sm:$0xff]
    %v37 = vld [vmem:[#allocation2 + $0x8] sm:$0xff]
    %v38 = vld [vmem:[#allocation2 + $0x10] sm:$0xff]
    %v39 = vld [vmem:[#allocation2 + $0x18] sm:$0xff]
    %v40 = vld [vmem:[#allocation2 + $0x20] sm:$0xff]
    %s41 = scalar_lea.vmem [#allocation2], 40
    %v42 = vld [vmem:[%s41] sm:$0xff]
    %v43 = vld [vmem:[%s41 + $0x8] sm:$0xff]
    %v44 = vld [vmem:[%s41 + $0x10] sm:$0xff]
    %v45 = vld [vmem:[%s41 + $0x18] sm:$0xff]
    %v46 = vld [vmem:[%s41 + $0x20] sm:$0xff]
    %v47 = vld [vmem:[%s4] sm:$0xff]
    %v48 = vld [vmem:[%s4 + $0x8] sm:$0xff]
    %v49 = vld [vmem:[%s4 + $0x10] sm:$0xff]
    %v50 = vld [vmem:[%s4 + $0x18] sm:$0xff]
    %v51 = vld [vmem:[%s4 + $0x20] sm:$0x1]
    %v52 = vld [vmem:[%s0] sm:$0xff]
    %v53 = vld [vmem:[%s0 + $0x8] sm:$0xff]
    %v54 = vperm.slane %v36, 4
    %vm55 = vcmask 31744
    %v57 = vsel %vm55, %v52, 0
    %v60 = vsel %vm55, %v53, 0
    %vm62 = vcmask 1043456
    %v64 = vsel %vm62, %v36, 0
    %66 = vmatpush.msra.mxu0 0.0
    %67 = vmatpush.msra.mxu0 0.0
    %68 = vmatpush.msra.mxu0 0.0
    %69 = vmatpush.msra.mxu0 0.0
    %70 = vmatpush.msra.mxu0 0.0
    %71 = vmatpush.msra.mxu0 0.0
    %72 = vmatpush.msra.mxu0 0.0
    %73 = vmatpush.msra.mxu0 0.0
    %74 = vmatpush.msra.mxu0 0.0
    %75 = vmatpush.msra.mxu0 0.0
    %76 = vmatpush.msra.mxu0 0.0
    %77 = vmatpush.msra.mxu0 0.0
    %78 = vmatpush.msra.mxu0 0.0
    %79 = vmatpush.msra.mxu0 0.0
    %80 = vmatpush.msra.mxu0 0.0
    %81 = vmatpush.msra.mxu0 %v64
    %82 = vmatmul.f32.gmra.mxu0 %v57
    %v83 = vpop.f32.mrf.mxu0
    %v84 = vadd.f32 %v54, %v83
    %85 = vmatmul.f32.gmra.mxu0 %v60
    %v86 = vpop.f32.mrf.mxu0
    %v87 = vadd.f32 %v54, %v86
    %88 = vdwg.mxu0
    %v89 = vld [vmem:[%s1] sm:$0xff]
    %v90 = vld [vmem:[%s1 + $0x8] sm:$0xff]
    %v91 = vperm.slane %v42, 4
    %v93 = vsel %vm55, %v89, 0
    %v96 = vsel %vm55, %v90, 0
    %v99 = vsel %vm62, %v42, 0
    %101 = vmatpush.msra.mxu0 0.0
    %102 = vmatpush.msra.mxu0 0.0
    %103 = vmatpush.msra.mxu0 0.0
    %104 = vmatpush.msra.mxu0 0.0
    %105 = vmatpush.msra.mxu0 0.0
    %106 = vmatpush.msra.mxu0 0.0
    %107 = vmatpush.msra.mxu0 0.0
    %108 = vmatpush.msra.mxu0 0.0
    %109 = vmatpush.msra.mxu0 0.0
    %110 = vmatpush.msra.mxu0 0.0
    %111 = vmatpush.msra.mxu0 0.0
    %112 = vmatpush.msra.mxu0 0.0
    %113 = vmatpush.msra.mxu0 0.0
    %114 = vmatpush.msra.mxu0 0.0
    %115 = vmatpush.msra.mxu0 0.0
    %116 = vmatpush.msra.mxu0 %v99
    %117 = vmatmul.f32.gmra.mxu0 %v93
    %v118 = vpop.f32.mrf.mxu0
    %v119 = vadd.f32 %v91, %v118
    %120 = vmatmul.f32.gmra.mxu0 %v96
    %v121 = vpop.f32.mrf.mxu0
    %v122 = vadd.f32 %v91, %v121
    %123 = vdwg.mxu0
    %v125 = vrot.slane %v87, 7
    %vm127 = vcmask 1040384
    %v128 = vsel %vm127, %v84, %v125
    %vm129 = vcmask 261120
    %v131 = vsel %vm129, 0.0, 0
    %133 = vmatpush.msra.mxu0 0.0
    %134 = vmatpush.msra.mxu0 0.0
    %135 = vmatpush.msra.mxu0 0.0
    %136 = vmatpush.msra.mxu0 0.0
    %137 = vmatpush.msra.mxu0 0.0
    %138 = vmatpush.msra.mxu0 0.0
    %139 = vmatpush.msra.mxu0 0.0
    %140 = vmatpush.msra.mxu0 0.0
    %141 = vmatpush.msra.mxu0 0.0
    %142 = vmatpush.msra.mxu0 0.0
    %143 = vmatpush.msra.mxu0 0.0
    %144 = vmatpush.msra.mxu0 0.0
    %145 = vmatpush.msra.mxu0 %v40
    %146 = vmatpush.msra.mxu0 %v39
    %147 = vmatpush.msra.mxu0 %v38
    %148 = vmatpush.msra.mxu0 %v37
    %149 = vmatmul.f32.gmra.mxu0 %v131
    %v150 = vpop.f32.mrf.mxu0
    %v151 = vadd.f32 0.0, %v150
    %152 = vdwg.mxu0
    %v153 = vadd.f32 %v128, %v151
    %v154 = vxor.u32 %v153, 2147483648
    %v155 = vmul.f32 %v154, 1.442695
    %v156 = vpow.pop %v155
    %v157 = vadd.f32 %v156, 1.0
    %v158 = vrcp.pop %v157
    %v159 = vmul.f32 %v157, %v158
    %v160 = vsub.f32 1.0, %v159
    %v161 = vmul.f32 %v158, %v160
    %v162 = vadd.f32 %v158, %v161
    %vm163 = vweird.f32 %v157
    %vm164 = vweird.f32 %v158
    %vm165 = vmor %vm163, %vm164
    %v166 = vsel %vm165, %v158, %v162
    %v167 = vand.u32 2147483647, %v157
    %vm168 = vcmp.eq.f32.partialorder %v167, 8.507059e+37
    %v169 = vand.u32 %v157, 2147483648
    %v170 = vor.u32 1.1754944e-38, %v169
    %v171 = vsel %vm168, %v170, %v166
    %v172 = vmul.f32 1.0, %v171
    %v173 = vperm.slane %v36, 5
    %175 = vrot.lane.b32.xlu0 %v173, 64
    %v176 = vpop.permute.xlu0 %175
    %v178 = vadd.f32 %v151, %v176
    %180 = vrot.lane.b32.xlu0 %v178, 64
    %v181 = vpop.permute.xlu0 %180
    %v183 = vmul.f32 %v172, %v181
    %185 = vrot.lane.b32.xlu0 %v183, 64
    %v186 = vpop.permute.xlu0 %185
    %v188 = vadd.f32 %v128, %v186
    %v189 = vtanh.pop %v188
    %v190 = vsub.f32 1.0, %v172
    %192 = vrot.lane.b32.xlu0 %v189, 96
    %v193 = vpop.permute.xlu0 %192
    %v195 = vmul.f32 %v190, %v193
    %v196 = vmul.f32 %v172, 0.0
    %v197 = vadd.f32 %v195, %v196
    %v199 = vrot.slane %v84, 1
    %v201 = vsel %vm127, %v199, %v87
    %203 = vrot.lane.b32.xlu0 %v197, 96
    %v204 = vpop.permute.xlu0 %203
    %v205 = vsel %vm129, %v204, 0
    %207 = vmatpush.msra.mxu0 0.0
    %208 = vmatpush.msra.mxu0 0.0
    %209 = vmatpush.msra.mxu0 0.0
    %210 = vmatpush.msra.mxu0 0.0
    %211 = vmatpush.msra.mxu0 0.0
    %212 = vmatpush.msra.mxu0 0.0
    %213 = vmatpush.msra.mxu0 0.0
    %214 = vmatpush.msra.mxu0 0.0
    %215 = vmatpush.msra.mxu0 0.0
    %216 = vmatpush.msra.mxu0 0.0
    %217 = vmatpush.msra.mxu0 0.0
    %218 = vmatpush.msra.mxu0 0.0
    %219 = vmatpush.msra.mxu0 %v40
    %220 = vmatpush.msra.mxu0 %v39
    %221 = vmatpush.msra.mxu0 %v38
    %222 = vmatpush.msra.mxu0 %v37
    %223 = vmatmul.f32.gmra.mxu0 %v205
    %v224 = vpop.f32.mrf.mxu0
    %v225 = vadd.f32 0.0, %v224
    %226 = vdwg.mxu0
    %v227 = vadd.f32 %v201, %v225
    %v228 = vxor.u32 %v227, 2147483648
    %v229 = vmul.f32 %v228, 1.442695
    %v230 = vpow.pop %v229
    %v231 = vadd.f32 %v230, 1.0
    %v232 = vrcp.pop %v231
    %v233 = vmul.f32 %v231, %v232
    %v234 = vsub.f32 1.0, %v233
    %v235 = vmul.f32 %v232, %v234
    %v236 = vadd.f32 %v232, %v235
    %vm237 = vweird.f32 %v231
    %vm238 = vweird.f32 %v232
    %vm239 = vmor %vm237, %vm238
    %v240 = vsel %vm239, %v232, %v236
    %v241 = vand.u32 2147483647, %v231
    %vm242 = vcmp.eq.f32.partialorder %v241, 8.507059e+37
    %v243 = vand.u32 %v231, 2147483648
    %v244 = vor.u32 1.1754944e-38, %v243
    %v245 = vsel %vm242, %v244, %v240
    %v246 = vmul.f32 1.0, %v245
    %v247 = vadd.f32 %v225, %v176
    %249 = vrot.lane.b32.xlu0 %v247, 64
    %v250 = vpop.permute.xlu0 %249
    %v252 = vmul.f32 %v246, %v250
    %254 = vrot.lane.b32.xlu0 %v252, 64
    %v255 = vpop.permute.xlu0 %254
    %v257 = vadd.f32 %v201, %v255
    %v258 = vtanh.pop %v257
    %v259 = vsub.f32 1.0, %v246
    %261 = vrot.lane.b32.xlu0 %v258, 96
    %v262 = vpop.permute.xlu0 %261
    %v264 = vmul.f32 %v259, %v262
    %v265 = vmul.f32 %v246, %v197
    %v266 = vadd.f32 %v264, %v265
    %v267 = vrot.slane %v84, 2
    %v269 = vrot.slane %v87, 1
    %v271 = vsel %vm127, %v267, %v269
    %273 = vrot.lane.b32.xlu0 %v266, 96
    %v274 = vpop.permute.xlu0 %273
    %v275 = vsel %vm129, %v274, 0
    %277 = vmatpush.msra.mxu0 0.0
    %278 = vmatpush.msra.mxu0 0.0
    %279 = vmatpush.msra.mxu0 0.0
    %280 = vmatpush.msra.mxu0 0.0
    %281 = vmatpush.msra.mxu0 0.0
    %282 = vmatpush.msra.mxu0 0.0
    %283 = vmatpush.msra.mxu0 0.0
    %284 = vmatpush.msra.mxu0 0.0
    %285 = vmatpush.msra.mxu0 0.0
    %286 = vmatpush.msra.mxu0 0.0
    %287 = vmatpush.msra.mxu0 0.0
    %288 = vmatpush.msra.mxu0 0.0
    %289 = vmatpush.msra.mxu0 %v40
    %290 = vmatpush.msra.mxu0 %v39
    %291 = vmatpush.msra.mxu0 %v38
    %292 = vmatpush.msra.mxu0 %v37
    %293 = vmatmul.f32.gmra.mxu0 %v275
    %v294 = vpop.f32.mrf.mxu0
    %v295 = vadd.f32 0.0, %v294
    %296 = vdwg.mxu0
    %v297 = vadd.f32 %v271, %v295
    %v298 = vxor.u32 %v297, 2147483648
    %v299 = vmul.f32 %v298, 1.442695
    %v300 = vpow.pop %v299
    %v301 = vadd.f32 %v300, 1.0
    %v302 = vrcp.pop %v301
    %v303 = vmul.f32 %v301, %v302
    %v304 = vsub.f32 1.0, %v303
    %v305 = vmul.f32 %v302, %v304
    %v306 = vadd.f32 %v302, %v305
    %vm307 = vweird.f32 %v301
    %vm308 = vweird.f32 %v302
    %vm309 = vmor %vm307, %vm308
    %v310 = vsel %vm309, %v302, %v306
    %v311 = vand.u32 2147483647, %v301
    %vm312 = vcmp.eq.f32.partialorder %v311, 8.507059e+37
    %v313 = vand.u32 %v301, 2147483648
    %v314 = vor.u32 1.1754944e-38, %v313
    %v315 = vsel %vm312, %v314, %v310
    %v316 = vmul.f32 1.0, %v315
    %v317 = vadd.f32 %v295, %v176
    %319 = vrot.lane.b32.xlu0 %v317, 64
    %v320 = vpop.permute.xlu0 %319
    %v322 = vmul.f32 %v316, %v320
    %324 = vrot.lane.b32.xlu0 %v322, 64
    %v325 = vpop.permute.xlu0 %324
    %v327 = vadd.f32 %v271, %v325
    %v328 = vtanh.pop %v327
    %v329 = vsub.f32 1.0, %v316
    %331 = vrot.lane.b32.xlu0 %v328, 96
    %v332 = vpop.permute.xlu0 %331
    %v334 = vmul.f32 %v329, %v332
    %v335 = vmul.f32 %v316, %v266
    %v336 = vadd.f32 %v334, %v335
    %v337 = vrot.slane %v84, 3
    %v339 = vrot.slane %v87, 2
    %v341 = vsel %vm127, %v337, %v339
    %343 = vrot.lane.b32.xlu0 %v336, 96
    %v344 = vpop.permute.xlu0 %343
    %v345 = vsel %vm129, %v344, 0
    %347 = vmatpush.msra.mxu0 0.0
    %348 = vmatpush.msra.mxu0 0.0
    %349 = vmatpush.msra.mxu0 0.0
    %350 = vmatpush.msra.mxu0 0.0
    %351 = vmatpush.msra.mxu0 0.0
    %352 = vmatpush.msra.mxu0 0.0
    %353 = vmatpush.msra.mxu0 0.0
    %354 = vmatpush.msra.mxu0 0.0
    %355 = vmatpush.msra.mxu0 0.0
    %356 = vmatpush.msra.mxu0 0.0
    %357 = vmatpush.msra.mxu0 0.0
    %358 = vmatpush.msra.mxu0 0.0
    %359 = vmatpush.msra.mxu0 %v40
    %360 = vmatpush.msra.mxu0 %v39
    %361 = vmatpush.msra.mxu0 %v38
    %362 = vmatpush.msra.mxu0 %v37
    %363 = vmatmul.f32.gmra.mxu0 %v345
    %v364 = vpop.f32.mrf.mxu0
    %v365 = vadd.f32 0.0, %v364
    %366 = vdwg.mxu0
    %v367 = vadd.f32 %v341, %v365
    %v368 = vxor.u32 %v367, 2147483648
    %v369 = vmul.f32 %v368, 1.442695
    %v370 = vpow.pop %v369
    %v371 = vadd.f32 %v370, 1.0
    %v372 = vrcp.pop %v371
    %v373 = vmul.f32 %v371, %v372
    %v374 = vsub.f32 1.0, %v373
    %v375 = vmul.f32 %v372, %v374
    %v376 = vadd.f32 %v372, %v375
    %vm377 = vweird.f32 %v371
    %vm378 = vweird.f32 %v372
    %vm379 = vmor %vm377, %vm378
    %v380 = vsel %vm379, %v372, %v376
    %v381 = vand.u32 2147483647, %v371
    %vm382 = vcmp.eq.f32.partialorder %v381, 8.507059e+37
    %v383 = vand.u32 %v371, 2147483648
    %v384 = vor.u32 1.1754944e-38, %v383
    %v385 = vsel %vm382, %v384, %v380
    %v386 = vmul.f32 1.0, %v385
    %v387 = vadd.f32 %v365, %v176
    %389 = vrot.lane.b32.xlu0 %v387, 64
    %v390 = vpop.permute.xlu0 %389
    %v392 = vmul.f32 %v386, %v390
    %394 = vrot.lane.b32.xlu0 %v392, 64
    %v395 = vpop.permute.xlu0 %394
    %v397 = vadd.f32 %v341, %v395
    %v398 = vtanh.pop %v397
    %v399 = vsub.f32 1.0, %v386
    %401 = vrot.lane.b32.xlu0 %v398, 96
    %v402 = vpop.permute.xlu0 %401
    %v404 = vmul.f32 %v399, %v402
    %v405 = vmul.f32 %v386, %v336
    %v406 = vadd.f32 %v404, %v405
    %v407 = vrot.slane %v84, 4
    %v409 = vrot.slane %v87, 3
    %v411 = vsel %vm127, %v407, %v409
    %413 = vrot.lane.b32.xlu0 %v406, 96
    %v414 = vpop.permute.xlu0 %413
    %v415 = vsel %vm129, %v414, 0
    %417 = vmatpush.msra.mxu0 0.0
    %418 = vmatpush.msra.mxu0 0.0
    %419 = vmatpush.msra.mxu0 0.0
    %420 = vmatpush.msra.mxu0 0.0
    %421 = vmatpush.msra.mxu0 0.0
    %422 = vmatpush.msra.mxu0 0.0
    %423 = vmatpush.msra.mxu0 0.0
    %424 = vmatpush.msra.mxu0 0.0
    %425 = vmatpush.msra.mxu0 0.0
    %426 = vmatpush.msra.mxu0 0.0
    %427 = vmatpush.msra.mxu0 0.0
    %428 = vmatpush.msra.mxu0 0.0
    %429 = vmatpush.msra.mxu0 %v40
    %430 = vmatpush.msra.mxu0 %v39
    %431 = vmatpush.msra.mxu0 %v38
    %432 = vmatpush.msra.mxu0 %v37
    %433 = vmatmul.f32.gmra.mxu0 %v415
    %v434 = vpop.f32.mrf.mxu0
    %v435 = vadd.f32 0.0, %v434
    %436 = vdwg.mxu0
    %v437 = vadd.f32 %v411, %v435
    %v438 = vxor.u32 %v437, 2147483648
    %v439 = vmul.f32 %v438, 1.442695
    %v440 = vpow.pop %v439
    %v441 = vadd.f32 %v440, 1.0
    %v442 = vrcp.pop %v441
    %v443 = vmul.f32 %v441, %v442
    %v444 = vsub.f32 1.0, %v443
    %v445 = vmul.f32 %v442, %v444
    %v446 = vadd.f32 %v442, %v445
    %vm447 = vweird.f32 %v441
    %vm448 = vweird.f32 %v442
    %vm449 = vmor %vm447, %vm448
    %v450 = vsel %vm449, %v442, %v446
    %v451 = vand.u32 2147483647, %v441
    %vm452 = vcmp.eq.f32.partialorder %v451, 8.507059e+37
    %v453 = vand.u32 %v441, 2147483648
    %v454 = vor.u32 1.1754944e-38, %v453
    %v455 = vsel %vm452, %v454, %v450
    %v456 = vmul.f32 1.0, %v455
    %v457 = vadd.f32 %v435, %v176
    %459 = vrot.lane.b32.xlu0 %v457, 64
    %v460 = vpop.permute.xlu0 %459
    %v462 = vmul.f32 %v456, %v460
    %464 = vrot.lane.b32.xlu0 %v462, 64
    %v465 = vpop.permute.xlu0 %464
    %v467 = vadd.f32 %v411, %v465
    %v468 = vtanh.pop %v467
    %v469 = vsub.f32 1.0, %v456
    %471 = vrot.lane.b32.xlu0 %v468, 96
    %v472 = vpop.permute.xlu0 %471
    %v474 = vmul.f32 %v469, %v472
    %v475 = vmul.f32 %v456, %v406
    %v476 = vadd.f32 %v474, %v475
    %v477 = vrot.slane %v84, 5
    %v479 = vrot.slane %v87, 4
    %v481 = vsel %vm127, %v477, %v479
    %483 = vrot.lane.b32.xlu0 %v476, 96
    %v484 = vpop.permute.xlu0 %483
    %v485 = vsel %vm129, %v484, 0
    %487 = vmatpush.msra.mxu0 0.0
    %488 = vmatpush.msra.mxu0 0.0
    %489 = vmatpush.msra.mxu0 0.0
    %490 = vmatpush.msra.mxu0 0.0
    %491 = vmatpush.msra.mxu0 0.0
    %492 = vmatpush.msra.mxu0 0.0
    %493 = vmatpush.msra.mxu0 0.0
    %494 = vmatpush.msra.mxu0 0.0
    %495 = vmatpush.msra.mxu0 0.0
    %496 = vmatpush.msra.mxu0 0.0
    %497 = vmatpush.msra.mxu0 0.0
    %498 = vmatpush.msra.mxu0 0.0
    %499 = vmatpush.msra.mxu0 %v40
    %500 = vmatpush.msra.mxu0 %v39
    %501 = vmatpush.msra.mxu0 %v38
    %502 = vmatpush.msra.mxu0 %v37
    %503 = vmatmul.f32.gmra.mxu0 %v485
    %v504 = vpop.f32.mrf.mxu0
    %v505 = vadd.f32 0.0, %v504
    %506 = vdwg.mxu0
    %v507 = vadd.f32 %v481, %v505
    %v508 = vxor.u32 %v507, 2147483648
    %v509 = vmul.f32 %v508, 1.442695
    %v510 = vpow.pop %v509
    %v511 = vadd.f32 %v510, 1.0
    %v512 = vrcp.pop %v511
    %v513 = vmul.f32 %v511, %v512
    %v514 = vsub.f32 1.0, %v513
    %v515 = vmul.f32 %v512, %v514
    %v516 = vadd.f32 %v512, %v515
    %vm517 = vweird.f32 %v511
    %vm518 = vweird.f32 %v512
    %vm519 = vmor %vm517, %vm518
    %v520 = vsel %vm519, %v512, %v516
    %v521 = vand.u32 2147483647, %v511
    %vm522 = vcmp.eq.f32.partialorder %v521, 8.507059e+37
    %v523 = vand.u32 %v511, 2147483648
    %v524 = vor.u32 1.1754944e-38, %v523
    %v525 = vsel %vm522, %v524, %v520
    %v526 = vmul.f32 1.0, %v525
    %v527 = vadd.f32 %v505, %v176
    %529 = vrot.lane.b32.xlu0 %v527, 64
    %v530 = vpop.permute.xlu0 %529
    %v532 = vmul.f32 %v526, %v530
    %534 = vrot.lane.b32.xlu0 %v532, 64
    %v535 = vpop.permute.xlu0 %534
    %v537 = vadd.f32 %v481, %v535
    %v538 = vtanh.pop %v537
    %v539 = vsub.f32 1.0, %v526
    %541 = vrot.lane.b32.xlu0 %v538, 96
    %v542 = vpop.permute.xlu0 %541
    %v544 = vmul.f32 %v539, %v542
    %v545 = vmul.f32 %v526, %v476
    %v546 = vadd.f32 %v544, %v545
    %v547 = vrot.slane %v84, 6
    %v549 = vrot.slane %v87, 5
    %v551 = vsel %vm127, %v547, %v549
    %553 = vrot.lane.b32.xlu0 %v546, 96
    %v554 = vpop.permute.xlu0 %553
    %v555 = vsel %vm129, %v554, 0
    %557 = vmatpush.msra.mxu0 0.0
    %558 = vmatpush.msra.mxu0 0.0
    %559 = vmatpush.msra.mxu0 0.0
    %560 = vmatpush.msra.mxu0 0.0
    %561 = vmatpush.msra.mxu0 0.0
    %562 = vmatpush.msra.mxu0 0.0
    %563 = vmatpush.msra.mxu0 0.0
    %564 = vmatpush.msra.mxu0 0.0
    %565 = vmatpush.msra.mxu0 0.0
    %566 = vmatpush.msra.mxu0 0.0
    %567 = vmatpush.msra.mxu0 0.0
    %568 = vmatpush.msra.mxu0 0.0
    %569 = vmatpush.msra.mxu0 %v40
    %570 = vmatpush.msra.mxu0 %v39
    %571 = vmatpush.msra.mxu0 %v38
    %572 = vmatpush.msra.mxu0 %v37
    %573 = vmatmul.f32.gmra.mxu0 %v555
    %v574 = vpop.f32.mrf.mxu0
    %v575 = vadd.f32 0.0, %v574
    %576 = vdwg.mxu0
    %v577 = vadd.f32 %v551, %v575
    %v578 = vxor.u32 %v577, 2147483648
    %v579 = vmul.f32 %v578, 1.442695
    %v580 = vpow.pop %v579
    %v581 = vadd.f32 %v580, 1.0
    %v582 = vrcp.pop %v581
    %v583 = vmul.f32 %v581, %v582
    %v584 = vsub.f32 1.0, %v583
    %v585 = vmul.f32 %v582, %v584
    %v586 = vadd.f32 %v582, %v585
    %vm587 = vweird.f32 %v581
    %vm588 = vweird.f32 %v582
    %vm589 = vmor %vm587, %vm588
    %v590 = vsel %vm589, %v582, %v586
    %v591 = vand.u32 2147483647, %v581
    %vm592 = vcmp.eq.f32.partialorder %v591, 8.507059e+37
    %v593 = vand.u32 %v581, 2147483648
    %v594 = vor.u32 1.1754944e-38, %v593
    %v595 = vsel %vm592, %v594, %v590
    %v596 = vmul.f32 1.0, %v595
    %v597 = vadd.f32 %v575, %v176
    %599 = vrot.lane.b32.xlu0 %v597, 64
    %v600 = vpop.permute.xlu0 %599
    %v602 = vmul.f32 %v596, %v600
    %604 = vrot.lane.b32.xlu0 %v602, 64
    %v605 = vpop.permute.xlu0 %604
    %v607 = vadd.f32 %v551, %v605
    %v608 = vtanh.pop %v607
    %v609 = vsub.f32 1.0, %v596
    %611 = vrot.lane.b32.xlu0 %v608, 96
    %v612 = vpop.permute.xlu0 %611
    %v614 = vmul.f32 %v609, %v612
    %v615 = vmul.f32 %v596, %v546
    %v616 = vadd.f32 %v614, %v615
    %v617 = vrot.slane %v84, 7
    %v619 = vrot.slane %v87, 6
    %v621 = vsel %vm127, %v617, %v619
    %623 = vrot.lane.b32.xlu0 %v616, 96
    %v624 = vpop.permute.xlu0 %623
    %v625 = vsel %vm129, %v624, 0
    %627 = vmatpush.msra.mxu0 0.0
    %628 = vmatpush.msra.mxu0 0.0
    %629 = vmatpush.msra.mxu0 0.0
    %630 = vmatpush.msra.mxu0 0.0
    %631 = vmatpush.msra.mxu0 0.0
    %632 = vmatpush.msra.mxu0 0.0
    %633 = vmatpush.msra.mxu0 0.0
    %634 = vmatpush.msra.mxu0 0.0
    %635 = vmatpush.msra.mxu0 0.0
    %636 = vmatpush.msra.mxu0 0.0
    %637 = vmatpush.msra.mxu0 0.0
    %638 = vmatpush.msra.mxu0 0.0
    %639 = vmatpush.msra.mxu0 %v40
    %640 = vmatpush.msra.mxu0 %v39
    %641 = vmatpush.msra.mxu0 %v38
    %642 = vmatpush.msra.mxu0 %v37
    %643 = vmatmul.f32.gmra.mxu0 %v625
    %v644 = vpop.f32.mrf.mxu0
    %v645 = vadd.f32 0.0, %v644
    %646 = vdwg.mxu0
    %v647 = vadd.f32 %v621, %v645
    %v648 = vxor.u32 %v647, 2147483648
    %v649 = vmul.f32 %v648, 1.442695
    %v650 = vpow.pop %v649
    %v651 = vadd.f32 %v650, 1.0
    %v652 = vrcp.pop %v651
    %v653 = vmul.f32 %v651, %v652
    %v654 = vsub.f32 1.0, %v653
    %v655 = vmul.f32 %v652, %v654
    %v656 = vadd.f32 %v652, %v655
    %vm657 = vweird.f32 %v651
    %vm658 = vweird.f32 %v652
    %vm659 = vmor %vm657, %vm658
    %v660 = vsel %vm659, %v652, %v656
    %v661 = vand.u32 2147483647, %v651
    %vm662 = vcmp.eq.f32.partialorder %v661, 8.507059e+37
    %v663 = vand.u32 %v651, 2147483648
    %v664 = vor.u32 1.1754944e-38, %v663
    %v665 = vsel %vm662, %v664, %v660
    %v666 = vmul.f32 1.0, %v665
    %v667 = vadd.f32 %v645, %v176
    %669 = vrot.lane.b32.xlu0 %v667, 64
    %v670 = vpop.permute.xlu0 %669
    %v672 = vmul.f32 %v666, %v670
    %674 = vrot.lane.b32.xlu0 %v672, 64
    %v675 = vpop.permute.xlu0 %674
    %v677 = vadd.f32 %v621, %v675
    %v678 = vtanh.pop %v677
    %v679 = vsub.f32 1.0, %v666
    %681 = vrot.lane.b32.xlu0 %v678, 96
    %v682 = vpop.permute.xlu0 %681
    %v684 = vmul.f32 %v679, %v682
    %v685 = vmul.f32 %v666, %v616
    %v686 = vadd.f32 %v684, %v685
    %v687 = vld [vmem:[%s2] sm:$0x3]
    %689 = vrot.lane.b32.xlu0 %v687, 32
    %v690 = vpop.permute.xlu0 %689
    %v692 = vadd.f32 %v686, %v690
    %694 = vrot.lane.b32.xlu0 %v692, 96
    %v695 = vpop.permute.xlu0 %694
    %v696 = vsel %vm129, %v695, 0
    %698 = vmatpush.msra.mxu0 0.0
    %699 = vmatpush.msra.mxu0 0.0
    %700 = vmatpush.msra.mxu0 0.0
    %701 = vmatpush.msra.mxu0 0.0
    %702 = vmatpush.msra.mxu0 0.0
    %703 = vmatpush.msra.mxu0 0.0
    %704 = vmatpush.msra.mxu0 0.0
    %705 = vmatpush.msra.mxu0 0.0
    %706 = vmatpush.msra.mxu0 0.0
    %707 = vmatpush.msra.mxu0 0.0
    %708 = vmatpush.msra.mxu0 0.0
    %709 = vmatpush.msra.mxu0 0.0
    %710 = vmatpush.msra.mxu0 %v46
    %711 = vmatpush.msra.mxu0 %v45
    %712 = vmatpush.msra.mxu0 %v44
    %713 = vmatpush.msra.mxu0 %v43
    %714 = vmatmul.f32.gmra.mxu0 %v696
    %v715 = vpop.f32.mrf.mxu0
    %v716 = vadd.f32 0.0, %v715
    %717 = vdwg.mxu0
    %v718 = vadd.f32 %v91, %v716
    %v719 = vxor.u32 %v718, 2147483648
    %v720 = vmul.f32 %v719, 1.442695
    %v721 = vpow.pop %v720
    %v722 = vadd.f32 %v721, 1.0
    %v723 = vrcp.pop %v722
    %v724 = vmul.f32 %v722, %v723
    %v725 = vsub.f32 1.0, %v724
    %v726 = vmul.f32 %v723, %v725
    %v727 = vadd.f32 %v723, %v726
    %vm728 = vweird.f32 %v722
    %vm729 = vweird.f32 %v723
    %vm730 = vmor %vm728, %vm729
    %v731 = vsel %vm730, %v723, %v727
    %v732 = vand.u32 2147483647, %v722
    %vm733 = vcmp.eq.f32.partialorder %v732, 8.507059e+37
    %v734 = vand.u32 %v722, 2147483648
    %v735 = vor.u32 1.1754944e-38, %v734
    %v736 = vsel %vm733, %v735, %v731
    %v737 = vmul.f32 1.0, %v736
    %v738 = vperm.slane %v42, 5
    %740 = vrot.lane.b32.xlu0 %v738, 64
    %v741 = vpop.permute.xlu0 %740
    %v743 = vadd.f32 %v716, %v741
    %745 = vrot.lane.b32.xlu0 %v743, 64
    %v746 = vpop.permute.xlu0 %745
    %v748 = vmul.f32 %v737, %v746
    %750 = vrot.lane.b32.xlu0 %v748, 64
    %v751 = vpop.permute.xlu0 %750
    %v753 = vadd.f32 %v91, %v751
    %v754 = vtanh.pop %v753
    %v755 = vsub.f32 1.0, %v737
    %757 = vrot.lane.b32.xlu0 %v754, 96
    %v758 = vpop.permute.xlu0 %757
    %v760 = vmul.f32 %v755, %v758
    %v761 = vmul.f32 %v737, %v692
    %v762 = vadd.f32 %v760, %v761
    %v764 = vrot.slane %v122, 7
    %v766 = vsel %vm127, %v119, %v764
    %768 = vrot.lane.b32.xlu0 %v762, 96
    %v769 = vpop.permute.xlu0 %768
    %v770 = vsel %vm129, %v769, 0
    %772 = vmatpush.msra.mxu0 0.0
    %773 = vmatpush.msra.mxu0 0.0
    %774 = vmatpush.msra.mxu0 0.0
    %775 = vmatpush.msra.mxu0 0.0
    %776 = vmatpush.msra.mxu0 0.0
    %777 = vmatpush.msra.mxu0 0.0
    %778 = vmatpush.msra.mxu0 0.0
    %779 = vmatpush.msra.mxu0 0.0
    %780 = vmatpush.msra.mxu0 0.0
    %781 = vmatpush.msra.mxu0 0.0
    %782 = vmatpush.msra.mxu0 0.0
    %783 = vmatpush.msra.mxu0 0.0
    %784 = vmatpush.msra.mxu0 %v46
    %785 = vmatpush.msra.mxu0 %v45
    %786 = vmatpush.msra.mxu0 %v44
    %787 = vmatpush.msra.mxu0 %v43
    %788 = vmatmul.f32.gmra.mxu0 %v770
    %v789 = vpop.f32.mrf.mxu0
    %v790 = vadd.f32 0.0, %v789
    %791 = vdwg.mxu0
    %v792 = vadd.f32 %v766, %v790
    %v793 = vxor.u32 %v792, 2147483648
    %v794 = vmul.f32 %v793, 1.442695
    %v795 = vpow.pop %v794
    %v796 = vadd.f32 %v795, 1.0
    %v797 = vrcp.pop %v796
    %v798 = vmul.f32 %v796, %v797
    %v799 = vsub.f32 1.0, %v798
    %v800 = vmul.f32 %v797, %v799
    %v801 = vadd.f32 %v797, %v800
    %vm802 = vweird.f32 %v796
    %vm803 = vweird.f32 %v797
    %vm804 = vmor %vm802, %vm803
    %v805 = vsel %vm804, %v797, %v801
    %v806 = vand.u32 2147483647, %v796
    %vm807 = vcmp.eq.f32.partialorder %v806, 8.507059e+37
    %v808 = vand.u32 %v796, 2147483648
    %v809 = vor.u32 1.1754944e-38, %v808
    %v810 = vsel %vm807, %v809, %v805
    %v811 = vmul.f32 1.0, %v810
    %v812 = vadd.f32 %v790, %v741
    %814 = vrot.lane.b32.xlu0 %v812, 64
    %v815 = vpop.permute.xlu0 %814
    %v817 = vmul.f32 %v811, %v815
    %819 = vrot.lane.b32.xlu0 %v817, 64
    %v820 = vpop.permute.xlu0 %819
    %v822 = vadd.f32 %v766, %v820
    %v823 = vtanh.pop %v822
    %v824 = vsub.f32 1.0, %v811
    %826 = vrot.lane.b32.xlu0 %v823, 96
    %v827 = vpop.permute.xlu0 %826
    %v829 = vmul.f32 %v824, %v827
    %v830 = vmul.f32 %v811, %v762
    %v831 = vadd.f32 %v829, %v830
    %v833 = vrot.slane %v119, 1
    %v835 = vsel %vm127, %v833, %v122
    %837 = vrot.lane.b32.xlu0 %v831, 96
    %v838 = vpop.permute.xlu0 %837
    %v839 = vsel %vm129, %v838, 0
    %841 = vmatpush.msra.mxu0 0.0
    %842 = vmatpush.msra.mxu0 0.0
    %843 = vmatpush.msra.mxu0 0.0
    %844 = vmatpush.msra.mxu0 0.0
    %845 = vmatpush.msra.mxu0 0.0
    %846 = vmatpush.msra.mxu0 0.0
    %847 = vmatpush.msra.mxu0 0.0
    %848 = vmatpush.msra.mxu0 0.0
    %849 = vmatpush.msra.mxu0 0.0
    %850 = vmatpush.msra.mxu0 0.0
    %851 = vmatpush.msra.mxu0 0.0
    %852 = vmatpush.msra.mxu0 0.0
    %853 = vmatpush.msra.mxu0 %v46
    %854 = vmatpush.msra.mxu0 %v45
    %855 = vmatpush.msra.mxu0 %v44
    %856 = vmatpush.msra.mxu0 %v43
    %857 = vmatmul.f32.gmra.mxu0 %v839
    %v858 = vpop.f32.mrf.mxu0
    %v859 = vadd.f32 0.0, %v858
    %860 = vdwg.mxu0
    %v861 = vadd.f32 %v835, %v859
    %v862 = vxor.u32 %v861, 2147483648
    %v863 = vmul.f32 %v862, 1.442695
    %v864 = vpow.pop %v863
    %v865 = vadd.f32 %v864, 1.0
    %v866 = vrcp.pop %v865
    %v867 = vmul.f32 %v865, %v866
    %v868 = vsub.f32 1.0, %v867
    %v869 = vmul.f32 %v866, %v868
    %v870 = vadd.f32 %v866, %v869
    %vm871 = vweird.f32 %v865
    %vm872 = vweird.f32 %v866
    %vm873 = vmor %vm871, %vm872
    %v874 = vsel %vm873, %v866, %v870
    %v875 = vand.u32 2147483647, %v865
    %vm876 = vcmp.eq.f32.partialorder %v875, 8.507059e+37
    %v877 = vand.u32 %v865, 2147483648
    %v878 = vor.u32 1.1754944e-38, %v877
    %v879 = vsel %vm876, %v878, %v874
    %v880 = vmul.f32 1.0, %v879
    %v881 = vadd.f32 %v859, %v741
    %883 = vrot.lane.b32.xlu0 %v881, 64
    %v884 = vpop.permute.xlu0 %883
    %v886 = vmul.f32 %v880, %v884
    %888 = vrot.lane.b32.xlu0 %v886, 64
    %v889 = vpop.permute.xlu0 %888
    %v891 = vadd.f32 %v835, %v889
    %v892 = vtanh.pop %v891
    %v893 = vsub.f32 1.0, %v880
    %895 = vrot.lane.b32.xlu0 %v892, 96
    %v896 = vpop.permute.xlu0 %895
    %v898 = vmul.f32 %v893, %v896
    %v899 = vmul.f32 %v880, %v831
    %v900 = vadd.f32 %v898, %v899
    %v901 = vrot.slane %v119, 2
    %v903 = vrot.slane %v122, 1
    %v905 = vsel %vm127, %v901, %v903
    %907 = vrot.lane.b32.xlu0 %v900, 96
    %v908 = vpop.permute.xlu0 %907
    %v909 = vsel %vm129, %v908, 0
    %911 = vmatpush.msra.mxu0 0.0
    %912 = vmatpush.msra.mxu0 0.0
    %913 = vmatpush.msra.mxu0 0.0
    %914 = vmatpush.msra.mxu0 0.0
    %915 = vmatpush.msra.mxu0 0.0
    %916 = vmatpush.msra.mxu0 0.0
    %917 = vmatpush.msra.mxu0 0.0
    %918 = vmatpush.msra.mxu0 0.0
    %919 = vmatpush.msra.mxu0 0.0
    %920 = vmatpush.msra.mxu0 0.0
    %921 = vmatpush.msra.mxu0 0.0
    %922 = vmatpush.msra.mxu0 0.0
    %923 = vmatpush.msra.mxu0 %v46
    %924 = vmatpush.msra.mxu0 %v45
    %925 = vmatpush.msra.mxu0 %v44
    %926 = vmatpush.msra.mxu0 %v43
    %927 = vmatmul.f32.gmra.mxu0 %v909
    %v928 = vpop.f32.mrf.mxu0
    %v929 = vadd.f32 0.0, %v928
    %930 = vdwg.mxu0
    %v931 = vadd.f32 %v905, %v929
    %v932 = vxor.u32 %v931, 2147483648
    %v933 = vmul.f32 %v932, 1.442695
    %v934 = vpow.pop %v933
    %v935 = vadd.f32 %v934, 1.0
    %v936 = vrcp.pop %v935
    %v937 = vmul.f32 %v935, %v936
    %v938 = vsub.f32 1.0, %v937
    %v939 = vmul.f32 %v936, %v938
    %v940 = vadd.f32 %v936, %v939
    %vm941 = vweird.f32 %v935
    %vm942 = vweird.f32 %v936
    %vm943 = vmor %vm941, %vm942
    %v944 = vsel %vm943, %v936, %v940
    %v945 = vand.u32 2147483647, %v935
    %vm946 = vcmp.eq.f32.partialorder %v945, 8.507059e+37
    %v947 = vand.u32 %v935, 2147483648
    %v948 = vor.u32 1.1754944e-38, %v947
    %v949 = vsel %vm946, %v948, %v944
    %v950 = vmul.f32 1.0, %v949
    %v951 = vadd.f32 %v929, %v741
    %953 = vrot.lane.b32.xlu0 %v951, 64
    %v954 = vpop.permute.xlu0 %953
    %v956 = vmul.f32 %v950, %v954
    %958 = vrot.lane.b32.xlu0 %v956, 64
    %v959 = vpop.permute.xlu0 %958
    %v961 = vadd.f32 %v905, %v959
    %v962 = vtanh.pop %v961
    %v963 = vsub.f32 1.0, %v950
    %965 = vrot.lane.b32.xlu0 %v962, 96
    %v966 = vpop.permute.xlu0 %965
    %v968 = vmul.f32 %v963, %v966
    %v969 = vmul.f32 %v950, %v900
    %v970 = vadd.f32 %v968, %v969
    %v971 = vrot.slane %v119, 3
    %v973 = vrot.slane %v122, 2
    %v975 = vsel %vm127, %v971, %v973
    %977 = vrot.lane.b32.xlu0 %v970, 96
    %v978 = vpop.permute.xlu0 %977
    %v979 = vsel %vm129, %v978, 0
    %981 = vmatpush.msra.mxu0 0.0
    %982 = vmatpush.msra.mxu0 0.0
    %983 = vmatpush.msra.mxu0 0.0
    %984 = vmatpush.msra.mxu0 0.0
    %985 = vmatpush.msra.mxu0 0.0
    %986 = vmatpush.msra.mxu0 0.0
    %987 = vmatpush.msra.mxu0 0.0
    %988 = vmatpush.msra.mxu0 0.0
    %989 = vmatpush.msra.mxu0 0.0
    %990 = vmatpush.msra.mxu0 0.0
    %991 = vmatpush.msra.mxu0 0.0
    %992 = vmatpush.msra.mxu0 0.0
    %993 = vmatpush.msra.mxu0 %v46
    %994 = vmatpush.msra.mxu0 %v45
    %995 = vmatpush.msra.mxu0 %v44
    %996 = vmatpush.msra.mxu0 %v43
    %997 = vmatmul.f32.gmra.mxu0 %v979
    %v998 = vpop.f32.mrf.mxu0
    %v999 = vadd.f32 0.0, %v998
    %1000 = vdwg.mxu0
    %v1001 = vadd.f32 %v975, %v999
    %v1002 = vxor.u32 %v1001, 2147483648
    %v1003 = vmul.f32 %v1002, 1.442695
    %v1004 = vpow.pop %v1003
    %v1005 = vadd.f32 %v1004, 1.0
    %v1006 = vrcp.pop %v1005
    %v1007 = vmul.f32 %v1005, %v1006
    %v1008 = vsub.f32 1.0, %v1007
    %v1009 = vmul.f32 %v1006, %v1008
    %v1010 = vadd.f32 %v1006, %v1009
    %vm1011 = vweird.f32 %v1005
    %vm1012 = vweird.f32 %v1006
    %vm1013 = vmor %vm1011, %vm1012
    %v1014 = vsel %vm1013, %v1006, %v1010
    %v1015 = vand.u32 2147483647, %v1005
    %vm1016 = vcmp.eq.f32.partialorder %v1015, 8.507059e+37
    %v1017 = vand.u32 %v1005, 2147483648
    %v1018 = vor.u32 1.1754944e-38, %v1017
    %v1019 = vsel %vm1016, %v1018, %v1014
    %v1020 = vmul.f32 1.0, %v1019
    %v1021 = vadd.f32 %v999, %v741
    %1023 = vrot.lane.b32.xlu0 %v1021, 64
    %v1024 = vpop.permute.xlu0 %1023
    %v1026 = vmul.f32 %v1020, %v1024
    %1028 = vrot.lane.b32.xlu0 %v1026, 64
    %v1029 = vpop.permute.xlu0 %1028
    %v1031 = vadd.f32 %v975, %v1029
    %v1032 = vtanh.pop %v1031
    %v1033 = vsub.f32 1.0, %v1020
    %1035 = vrot.lane.b32.xlu0 %v1032, 96
    %v1036 = vpop.permute.xlu0 %1035
    %v1038 = vmul.f32 %v1033, %v1036
    %v1039 = vmul.f32 %v1020, %v970
    %v1040 = vadd.f32 %v1038, %v1039
    %v1041 = vrot.slane %v119, 4
    %v1043 = vrot.slane %v122, 3
    %v1045 = vsel %vm127, %v1041, %v1043
    %1047 = vrot.lane.b32.xlu0 %v1040, 96
    %v1048 = vpop.permute.xlu0 %1047
    %v1049 = vsel %vm129, %v1048, 0
    %1051 = vmatpush.msra.mxu0 0.0
    %1052 = vmatpush.msra.mxu0 0.0
    %1053 = vmatpush.msra.mxu0 0.0
    %1054 = vmatpush.msra.mxu0 0.0
    %1055 = vmatpush.msra.mxu0 0.0
    %1056 = vmatpush.msra.mxu0 0.0
    %1057 = vmatpush.msra.mxu0 0.0
    %1058 = vmatpush.msra.mxu0 0.0
    %1059 = vmatpush.msra.mxu0 0.0
    %1060 = vmatpush.msra.mxu0 0.0
    %1061 = vmatpush.msra.mxu0 0.0
    %1062 = vmatpush.msra.mxu0 0.0
    %1063 = vmatpush.msra.mxu0 %v46
    %1064 = vmatpush.msra.mxu0 %v45
    %1065 = vmatpush.msra.mxu0 %v44
    %1066 = vmatpush.msra.mxu0 %v43
    %1067 = vmatmul.f32.gmra.mxu0 %v1049
    %v1068 = vpop.f32.mrf.mxu0
    %v1069 = vadd.f32 0.0, %v1068
    %1070 = vdwg.mxu0
    %v1071 = vadd.f32 %v1045, %v1069
    %v1072 = vxor.u32 %v1071, 2147483648
    %v1073 = vmul.f32 %v1072, 1.442695
    %v1074 = vpow.pop %v1073
    %v1075 = vadd.f32 %v1074, 1.0
    %v1076 = vrcp.pop %v1075
    %v1077 = vmul.f32 %v1075, %v1076
    %v1078 = vsub.f32 1.0, %v1077
    %v1079 = vmul.f32 %v1076, %v1078
    %v1080 = vadd.f32 %v1076, %v1079
    %vm1081 = vweird.f32 %v1075
    %vm1082 = vweird.f32 %v1076
    %vm1083 = vmor %vm1081, %vm1082
    %v1084 = vsel %vm1083, %v1076, %v1080
    %v1085 = vand.u32 2147483647, %v1075
    %vm1086 = vcmp.eq.f32.partialorder %v1085, 8.507059e+37
    %v1087 = vand.u32 %v1075, 2147483648
    %v1088 = vor.u32 1.1754944e-38, %v1087
    %v1089 = vsel %vm1086, %v1088, %v1084
    %v1090 = vmul.f32 1.0, %v1089
    %v1091 = vadd.f32 %v1069, %v741
    %1093 = vrot.lane.b32.xlu0 %v1091, 64
    %v1094 = vpop.permute.xlu0 %1093
    %v1096 = vmul.f32 %v1090, %v1094
    %1098 = vrot.lane.b32.xlu0 %v1096, 64
    %v1099 = vpop.permute.xlu0 %1098
    %v1101 = vadd.f32 %v1045, %v1099
    %v1102 = vtanh.pop %v1101
    %v1103 = vsub.f32 1.0, %v1090
    %1105 = vrot.lane.b32.xlu0 %v1102, 96
    %v1106 = vpop.permute.xlu0 %1105
    %v1108 = vmul.f32 %v1103, %v1106
    %v1109 = vmul.f32 %v1090, %v1040
    %v1110 = vadd.f32 %v1108, %v1109
    %v1111 = vrot.slane %v119, 5
    %v1113 = vrot.slane %v122, 4
    %v1115 = vsel %vm127, %v1111, %v1113
    %1117 = vrot.lane.b32.xlu0 %v1110, 96
    %v1118 = vpop.permute.xlu0 %1117
    %v1119 = vsel %vm129, %v1118, 0
    %1121 = vmatpush.msra.mxu0 0.0
    %1122 = vmatpush.msra.mxu0 0.0
    %1123 = vmatpush.msra.mxu0 0.0
    %1124 = vmatpush.msra.mxu0 0.0
    %1125 = vmatpush.msra.mxu0 0.0
    %1126 = vmatpush.msra.mxu0 0.0
    %1127 = vmatpush.msra.mxu0 0.0
    %1128 = vmatpush.msra.mxu0 0.0
    %1129 = vmatpush.msra.mxu0 0.0
    %1130 = vmatpush.msra.mxu0 0.0
    %1131 = vmatpush.msra.mxu0 0.0
    %1132 = vmatpush.msra.mxu0 0.0
    %1133 = vmatpush.msra.mxu0 %v46
    %1134 = vmatpush.msra.mxu0 %v45
    %1135 = vmatpush.msra.mxu0 %v44
    %1136 = vmatpush.msra.mxu0 %v43
    %1137 = vmatmul.f32.gmra.mxu0 %v1119
    %v1138 = vpop.f32.mrf.mxu0
    %v1139 = vadd.f32 0.0, %v1138
    %1140 = vdwg.mxu0
    %v1141 = vadd.f32 %v1115, %v1139
    %v1142 = vxor.u32 %v1141, 2147483648
    %v1143 = vmul.f32 %v1142, 1.442695
    %v1144 = vpow.pop %v1143
    %v1145 = vadd.f32 %v1144, 1.0
    %v1146 = vrcp.pop %v1145
    %v1147 = vmul.f32 %v1145, %v1146
    %v1148 = vsub.f32 1.0, %v1147
    %v1149 = vmul.f32 %v1146, %v1148
    %v1150 = vadd.f32 %v1146, %v1149
    %vm1151 = vweird.f32 %v1145
    %vm1152 = vweird.f32 %v1146
    %vm1153 = vmor %vm1151, %vm1152
    %v1154 = vsel %vm1153, %v1146, %v1150
    %v1155 = vand.u32 2147483647, %v1145
    %vm1156 = vcmp.eq.f32.partialorder %v1155, 8.507059e+37
    %v1157 = vand.u32 %v1145, 2147483648
    %v1158 = vor.u32 1.1754944e-38, %v1157
    %v1159 = vsel %vm1156, %v1158, %v1154
    %v1160 = vmul.f32 1.0, %v1159
    %v1161 = vadd.f32 %v1139, %v741
    %1163 = vrot.lane.b32.xlu0 %v1161, 64
    %v1164 = vpop.permute.xlu0 %1163
    %v1166 = vmul.f32 %v1160, %v1164
    %1168 = vrot.lane.b32.xlu0 %v1166, 64
    %v1169 = vpop.permute.xlu0 %1168
    %v1171 = vadd.f32 %v1115, %v1169
    %v1172 = vtanh.pop %v1171
    %v1173 = vsub.f32 1.0, %v1160
    %1175 = vrot.lane.b32.xlu0 %v1172, 96
    %v1176 = vpop.permute.xlu0 %1175
    %v1178 = vmul.f32 %v1173, %v1176
    %v1179 = vmul.f32 %v1160, %v1110
    %v1180 = vadd.f32 %v1178, %v1179
    %v1181 = vrot.slane %v119, 6
    %v1183 = vrot.slane %v122, 5
    %v1185 = vsel %vm127, %v1181, %v1183
    %1187 = vrot.lane.b32.xlu0 %v1180, 96
    %v1188 = vpop.permute.xlu0 %1187
    %v1189 = vsel %vm129, %v1188, 0
    %1191 = vmatpush.msra.mxu0 0.0
    %1192 = vmatpush.msra.mxu0 0.0
    %1193 = vmatpush.msra.mxu0 0.0
    %1194 = vmatpush.msra.mxu0 0.0
    %1195 = vmatpush.msra.mxu0 0.0
    %1196 = vmatpush.msra.mxu0 0.0
    %1197 = vmatpush.msra.mxu0 0.0
    %1198 = vmatpush.msra.mxu0 0.0
    %1199 = vmatpush.msra.mxu0 0.0
    %1200 = vmatpush.msra.mxu0 0.0
    %1201 = vmatpush.msra.mxu0 0.0
    %1202 = vmatpush.msra.mxu0 0.0
    %1203 = vmatpush.msra.mxu0 %v46
    %1204 = vmatpush.msra.mxu0 %v45
    %1205 = vmatpush.msra.mxu0 %v44
    %1206 = vmatpush.msra.mxu0 %v43
    %1207 = vmatmul.f32.gmra.mxu0 %v1189
    %v1208 = vpop.f32.mrf.mxu0
    %v1209 = vadd.f32 0.0, %v1208
    %1210 = vdwg.mxu0
    %v1211 = vadd.f32 %v1185, %v1209
    %v1212 = vxor.u32 %v1211, 2147483648
    %v1213 = vmul.f32 %v1212, 1.442695
    %v1214 = vpow.pop %v1213
    %v1215 = vadd.f32 %v1214, 1.0
    %v1216 = vrcp.pop %v1215
    %v1217 = vmul.f32 %v1215, %v1216
    %v1218 = vsub.f32 1.0, %v1217
    %v1219 = vmul.f32 %v1216, %v1218
    %v1220 = vadd.f32 %v1216, %v1219
    %vm1221 = vweird.f32 %v1215
    %vm1222 = vweird.f32 %v1216
    %vm1223 = vmor %vm1221, %vm1222
    %v1224 = vsel %vm1223, %v1216, %v1220
    %v1225 = vand.u32 2147483647, %v1215
    %vm1226 = vcmp.eq.f32.partialorder %v1225, 8.507059e+37
    %v1227 = vand.u32 %v1215, 2147483648
    %v1228 = vor.u32 1.1754944e-38, %v1227
    %v1229 = vsel %vm1226, %v1228, %v1224
    %v1230 = vmul.f32 1.0, %v1229
    %v1231 = vadd.f32 %v1209, %v741
    %1233 = vrot.lane.b32.xlu0 %v1231, 64
    %v1234 = vpop.permute.xlu0 %1233
    %v1236 = vmul.f32 %v1230, %v1234
    %1238 = vrot.lane.b32.xlu0 %v1236, 64
    %v1239 = vpop.permute.xlu0 %1238
    %v1241 = vadd.f32 %v1185, %v1239
    %v1242 = vtanh.pop %v1241
    %v1243 = vsub.f32 1.0, %v1230
    %1245 = vrot.lane.b32.xlu0 %v1242, 96
    %v1246 = vpop.permute.xlu0 %1245
    %v1248 = vmul.f32 %v1243, %v1246
    %v1249 = vmul.f32 %v1230, %v1180
    %v1250 = vadd.f32 %v1248, %v1249
    %v1251 = vrot.slane %v831, 7
    %v1253 = vrot.slane %v900, 6
    %v1255 = vrot.slane %v970, 5
    %v1257 = vrot.slane %v1040, 4
    %v1259 = vrot.slane %v1110, 3
    %v1261 = vrot.slane %v1180, 2
    %v1264 = vrot.slane %v1250, 1
    %v1266 = vrot.slane %v762, 1
    %v1268 = vrot.slane %v900, 7
    %v1270 = vrot.slane %v970, 6
    %v1272 = vrot.slane %v1040, 5
    %v1274 = vrot.slane %v1110, 4
    %v1276 = vrot.slane %v1180, 3
    %v1278 = vrot.slane %v1250, 2
    %v1280 = vsel %vm127, %v762, %v1251
    %vm1281 = vcmask 1041408
    %v1282 = vsel %vm1281, %v1280, %v1253
    %vm1283 = vcmask 1042432
    %v1284 = vsel %vm1283, %v1282, %v1255
    %v1285 = vsel %vm62, %v1284, %v1257
    %vm1286 = vcmask 1044480
    %v1287 = vsel %vm1286, %v1285, %v1259
    %vm1288 = vcmask 1045504
    %v1289 = vsel %vm1288, %v1287, %v1261
    %vm1290 = vcmask 1046528
    %v1291 = vsel %vm1290, %v1289, %v1264
    %v1292 = vsel %vm127, %v1266, %v831
    %v1293 = vsel %vm1281, %v1292, %v1268
    %v1294 = vsel %vm1283, %v1293, %v1270
    %v1295 = vsel %vm62, %v1294, %v1272
    %v1296 = vsel %vm1286, %v1295, %v1274
    %v1297 = vsel %vm1288, %v1296, %v1276
    %v1298 = vsel %vm1290, %v1297, %v1278
    %v1299 = vperm.slane %v51, 0
    %1302 = vrot.lane.b32.xlu0 %v1291, 96
    %v1303 = vpop.permute.xlu0 %1302
    %1304 = vrot.lane.b32.xlu0 %v1298, 96
    %v1305 = vpop.permute.xlu0 %1304
    %v1306 = vsel %vm129, %v1303, 0
    %v1308 = vsel %vm129, %v1305, 0
    %1310 = vmatpush.msra.mxu0 0.0
    %1311 = vmatpush.msra.mxu0 0.0
    %1312 = vmatpush.msra.mxu0 0.0
    %1313 = vmatpush.msra.mxu0 0.0
    %1314 = vmatpush.msra.mxu0 0.0
    %1315 = vmatpush.msra.mxu0 0.0
    %1316 = vmatpush.msra.mxu0 0.0
    %1317 = vmatpush.msra.mxu0 0.0
    %1318 = vmatpush.msra.mxu0 0.0
    %1319 = vmatpush.msra.mxu0 0.0
    %1320 = vmatpush.msra.mxu0 0.0
    %1321 = vmatpush.msra.mxu0 0.0
    %1322 = vmatpush.msra.mxu0 %v50
    %1323 = vmatpush.msra.mxu0 %v49
    %1324 = vmatpush.msra.mxu0 %v48
    %1325 = vmatpush.msra.mxu0 %v47
    %1326 = vmatmul.f32.gmra.mxu0 %v1306
    %v1327 = vpop.f32.mrf.mxu0
    %v1328 = vadd.f32 %v1299, %v1327
    %1329 = vmatmul.f32.gmra.mxu0 %v1308
    %v1330 = vpop.f32.mrf.mxu0
    %v1331 = vadd.f32 %v1299, %v1330
    %1332 = vdwg.mxu0
    %1333 = vst.msk [vmem:[%s5] sm:$0xff] %vm55, %v1328
    %1334 = vst.msk [vmem:[%s5 + $0x8] sm:$0xff] %vm55, %v1331
    // Predicated region
    $region26: #{netg_forward.1} parent=1 // pred_check
      _
    $region27: #{netg_forward.1} parent=1 // pred_check_branch
      %1336 = sbr.rel (0) target = $region29
    $region28: #{netg_forward.1} parent=1 // pred_region
      _
    $region29: #{netg_forward.1} parent=1 // pred_fallthru
      _
    // Predicated region
    $region30: #{netg_forward.1} parent=1 // pred_check
      _
    $region31: #{netg_forward.1} parent=1 // pred_check_branch
      %1338 = sbr.rel (0) target = $region33
    $region32: #{netg_forward.1} parent=1 // pred_region
      _
    $region33: #{netg_forward.1} parent=1 // pred_fallthru
      _
    %1339 = vsyncpa [#allocation3], 1

</llo_original>
